<compile_context>
chip_gen: v7x
topology: tpu7x:2x2x1
jax: 0.10.0
libtpu: 0.0.40
codegen_flags: <defaults>
</compile_context>

<pallas_src>
import functools

import jax
import jax.numpy as jnp
from jax.experimental import pallas as pl
from jax.experimental.pallas import tpu as pltpu


def _round_up(x, m):
    return ((x + m - 1) // m) * m


# ---------------------------------------------------------------------------
# Kernel: full LSTM rollout + linear head + clamp for one batch tile.
# ---------------------------------------------------------------------------
def lstm_head_kernel(x_ref, wih_ref, whh_ref, b_ref, wout_ref, bout_ref,
                     out_ref, xw_ref, *, action_max, unroll):
    T, Bt, D = x_ref.shape
    Hp = whh_ref.shape[0]

    # Hoisted input projection (off the recurrent critical path): one
    # (T*Bt, D) @ (D, 4Hp) MXU pass, bias folded in, parked in VMEM scratch.
    x2 = x_ref[...].reshape(T * Bt, D).astype(jnp.bfloat16)
    xw_ref[...] = (jnp.dot(x2, wih_ref[...],
                           preferred_element_type=jnp.float32)
                   + b_ref[...])                                 # (T*Bt, 4Hp) f32

    def step(t, carry):
        h, c = carry
        start = t * Bt
        if not isinstance(start, int):          # dynamic index (fori_loop path)
            start = pl.multiple_of(start, 8)
        # W_hh is re-streamed from VMEM each step on purpose (a (128,512)
        # value would occupy the whole vreg file and spill).
        # TODO(synk): keep W_hh latched in the MXU across the unrolled steps
        # with pltpu.matmul_push_rhs / matmul_acc_lhs / matmul_pop.
        gates = (xw_ref[pl.ds(start, Bt), :]
                 + jnp.dot(h.astype(jnp.bfloat16), whh_ref[...],
                           preferred_element_type=jnp.float32))  # (Bt, 4Hp)
        # Gate layout [i, f, o, g]: one sigmoid chain + one tanh chain per step.
        sig = jax.nn.sigmoid(gates[:, :3 * Hp])
        g_g = jnp.tanh(gates[:, 3 * Hp:])
        i_g = sig[:, 0 * Hp:1 * Hp]
        f_g = sig[:, 1 * Hp:2 * Hp]
        o_g = sig[:, 2 * Hp:3 * Hp]
        c = f_g * c + i_g * g_g
        h = o_g * jnp.tanh(c)
        return h, c

    # h_0 = c_0 = 0 (PyTorch default when no initial state is passed),
    # carried as (Bt, Hp) register values across the rollout.
    h = jnp.zeros((Bt, Hp), jnp.float32)
    c = jnp.zeros((Bt, Hp), jnp.float32)
    if T <= unroll:
        for t in range(T):                      # fully unrolled, static slices
            h, c = step(t, (h, c))
    else:
        # Large-T guard: bounded code size / vreg live ranges.
        h, c = jax.lax.fori_loop(0, T, step, (h, c), unroll=unroll)

    # hidden2out(h_T) + clamp; output slab is lane-dense (Op multiple of 128).
    out = (jnp.dot(h.astype(jnp.bfloat16), wout_ref[...],
                   preferred_element_type=jnp.float32) + bout_ref[...])
    out_ref[...] = jnp.clip(out, -action_max, action_max)


# ---------------------------------------------------------------------------
# Parameter padding / layout plumbing (wrapper side, ordinary XLA).
# ---------------------------------------------------------------------------
def _pad_params(params, H, Hp, PA, Op):
    """Reorder gates [i,f,g,o] -> [i,f,o,g], zero-pad H->Hp and PA->Op (exact),
    and cast matmul weights to bf16 (biases stay f32)."""
    w_ih, w_hh, b, w_out, b_out = params
    perm = jnp.array([0, 1, 3, 2], dtype=jnp.int32)      # i, f, o, g

    def fix_gate_cols(w):                                 # (..., 4H) -> (..., 4Hp)
        w4 = w.reshape(w.shape[:-1] + (4, H))
        w4 = jnp.take(w4, perm, axis=-2)
        w4 = jnp.pad(w4, [(0, 0)] * (w4.ndim - 1) + [(0, Hp - H)])
        return w4.reshape(w.shape[:-1] + (4 * Hp,))

    w_ih_p = fix_gate_cols(w_ih).astype(jnp.bfloat16)                    # (D, 4Hp)
    w_hh_p = jnp.pad(fix_gate_cols(w_hh),
                     ((0, Hp - H), (0, 0))).astype(jnp.bfloat16)         # (Hp, 4Hp)
    b_p = fix_gate_cols(b)                                               # (1, 4Hp)
    w_out_p = jnp.pad(w_out,
                      ((0, Hp - H), (0, Op - PA))).astype(jnp.bfloat16)  # (Hp, Op)
    b_out_p = jnp.pad(b_out, ((0, 0), (0, Op - PA)))                     # (1, Op)
    return w_ih_p, w_hh_p, b_p, w_out_p, b_out_p


def lstm_forward(trajectory, params, pred_length, action_dim, *,
                 action_max=1.0, batch_first=False, batch_tile=128, unroll=16):
    """Deterministic forward. Returns (action, None) like the PyTorch module."""
    trajectory = jnp.asarray(trajectory, jnp.float32)
    if batch_first:
        B, T, D = trajectory.shape
        x_tbd = jnp.transpose(trajectory, (1, 0, 2))      # time-major (T, B, D)
    else:
        T, D = trajectory.shape
        B = 1
        x_tbd = trajectory[:, None, :]

    H = params[1].shape[0]
    Hp = _round_up(H, 128)
    PA = pred_length * action_dim
    Op = _round_up(PA, 128)

    # Batch tiling: always fill all 8 sublanes; grid only for large batches.
    Bt = min(_round_up(B, 8), _round_up(batch_tile, 8))
    Bp = _round_up(B, Bt)
    nb = Bp // Bt

    x_p = jnp.pad(x_tbd, ((0, 0), (0, Bp - B), (0, 0)))
    w_ih_p, w_hh_p, b_p, w_out_p, b_out_p = _pad_params(params, H, Hp, PA, Op)

    kernel = functools.partial(lstm_head_kernel,
                               action_max=float(action_max), unroll=int(unroll))
    scratch_shapes = [pltpu.VMEM((T * Bt, 4 * Hp), jnp.float32)]
    out_shape = jax.ShapeDtypeStruct((Bp, Op), jnp.float32)

    # Explicit VMEM budget (matters when H scales; v7x physical VMEM is 64 MiB).
    w_bytes = (D * 4 * Hp + Hp * 4 * Hp + Hp * Op) * 2 + (4 * Hp + Op) * 4
    io_bytes = (T * Bt * D + Bt * Op) * 4
    scr_bytes = T * Bt * 4 * Hp * 4
    vmem_limit = int(min(max(scr_bytes + 2 * (w_bytes + io_bytes) + (4 << 20),
                             16 << 20), 64 << 20))

    if nb == 1:
        # Gridless: whole-array, single-buffered VMEM residency (no pipeline
        # double-buffering of the weights).
        out = pl.pallas_call(
            kernel,
            out_shape=out_shape,
            in_specs=[pl.BlockSpec(memory_space=pltpu.MemorySpace.VMEM)] * 6,
            out_specs=pl.BlockSpec(memory_space=pltpu.MemorySpace.VMEM),
            scratch_shapes=scratch_shapes,
            compiler_params=pltpu.CompilerParams(vmem_limit_bytes=vmem_limit),
        )(x_p, w_ih_p, w_hh_p, b_p, w_out_p, b_out_p)
    else:
        # Batch-tile grid axis, marked "parallel" so v7x shards tiles across
        # both TensorCores (no effect on single-TC v5e/v6e).
        out = pl.pallas_call(
            kernel,
            out_shape=out_shape,
            grid=(nb,),
            in_specs=[
                pl.BlockSpec((T, Bt, D), lambda i: (0, i, 0)),
                pl.BlockSpec((D, 4 * Hp), lambda i: (0, 0)),
                pl.BlockSpec((Hp, 4 * Hp), lambda i: (0, 0)),
                pl.BlockSpec((1, 4 * Hp), lambda i: (0, 0)),
                pl.BlockSpec((Hp, Op), lambda i: (0, 0)),
                pl.BlockSpec((1, Op), lambda i: (0, 0)),
            ],
            out_specs=pl.BlockSpec((Bt, Op), lambda i: (i, 0)),
            scratch_shapes=scratch_shapes,
            compiler_params=pltpu.CompilerParams(
                dimension_semantics=("parallel",),
                vmem_limit_bytes=vmem_limit),
        )(x_p, w_ih_p, w_hh_p, b_p, w_out_p, b_out_p)

    out = out[:B, :PA]
    if batch_first:
        action = out.reshape(B, pred_length, action_dim)
    else:
        action = out[0].reshape(pred_length, action_dim)
    return action, None


# ---------------------------------------------------------------------------
# Reference + synthetic init (for the self-test).
# ---------------------------------------------------------------------------
def lstm_reference(trajectory, params, pred_length, action_dim,
                   action_max=1.0, batch_first=False):
    """Pure-JAX reference with the kernel's numerics (bf16 matmul operands,
    f32 accumulation), PyTorch gate order and semantics."""
    w_ih, w_hh, b, w_out, b_out = params
    x = (jnp.transpose(trajectory, (1, 0, 2)) if batch_first
         else trajectory[:, None, :])
    T, B, _ = x.shape
    H = w_hh.shape[0]
    bf = jnp.bfloat16
    w_ih_b, w_hh_b, w_out_b = w_ih.astype(bf), w_hh.astype(bf), w_out.astype(bf)
    h = jnp.zeros((B, H), jnp.float32)
    c = jnp.zeros((B, H), jnp.float32)
    for t in range(T):
        xw = jnp.dot(x[t].astype(bf), w_ih_b,
                     preferred_element_type=jnp.float32) + b
        gates = xw + jnp.dot(h.astype(bf), w_hh_b,
                             preferred_element_type=jnp.float32)
        i_g = jax.nn.sigmoid(gates[:, 0 * H:1 * H])
        f_g = jax.nn.sigmoid(gates[:, 1 * H:2 * H])
        g_g = jnp.tanh(gates[:, 2 * H:3 * H])
        o_g = jax.nn.sigmoid(gates[:, 3 * H:4 * H])
        c = f_g * c + i_g * g_g
        h = o_g * jnp.tanh(c)
    out = jnp.dot(h.astype(bf), w_out_b,
                  preferred_element_type=jnp.float32) + b_out
    out = jnp.clip(out, -action_max, action_max)
    if batch_first:
        return out.reshape(B, pred_length, action_dim)
    return out[0].reshape(pred_length, action_dim)


def init_params(key, state_dim, hidden_dim, pred_length, action_dim):
    """Synthetic init mimicking PyTorch U(-1/sqrt(H), 1/sqrt(H)); weights stored
    transposed (so the kernel does x @ W), PyTorch gate order [i,f,g,o],
    b = b_ih + b_hh folded."""
    H = hidden_dim
    PA = pred_length * action_dim
    k = 1.0 / jnp.sqrt(jnp.float32(H))
    ks = jax.random.split(key, 6)
    u = lambda kk, shape: jax.random.uniform(kk, shape, jnp.float32, -k, k)
    w_ih = u(ks[0], (state_dim, 4 * H))
    w_hh = u(ks[1], (H, 4 * H))
    b = u(ks[2], (1, 4 * H)) + u(ks[3], (1, 4 * H))
    w_out = u(ks[4], (H, PA))
    b_out = u(ks[5], (1, PA))
    return (w_ih, w_hh, b, w_out, b_out)


if __name__ == "__main__":
    # TODO(synk): stochastic_forward (Normal sampling / log_prob) and the
    # use_softmax branch are not exercised by the default config and are left
    # unimplemented.
    hidden_dim, pred_length, state_dim, action_dim = 32, 4, 4, 2
    seq_len, action_max = 8, 1.0

    key = jax.random.PRNGKey(0)
    k_x, k_xb, k_p = jax.random.split(key, 3)
    params = init_params(k_p, state_dim, hidden_dim, pred_length, action_dim)

    # --- unbatched (batch_first=False): gridless, whole-array VMEM path ---
    traj = jax.random.normal(k_x, (seq_len, state_dim), jnp.float32)
    action, log_prob = lstm_forward(traj, params, pred_length, action_dim,
                                    action_max=action_max, batch_first=False)
    action = jax.block_until_ready(action)
    ref = lstm_reference(traj, params, pred_length, action_dim,
                         action_max=action_max, batch_first=False)
    assert action.shape == (pred_length, action_dim)
    assert log_prob is None
    assert bool(jnp.all(jnp.abs(action) <= action_max + 1e-6))
    assert bool(jnp.allclose(action, ref, atol=2e-2, rtol=2e-2)), (action, ref)

    # --- batched (batch_first=True): batch-tiled grid, "parallel" axis ---
    batch = 16
    traj_b = jax.random.normal(k_xb, (batch, seq_len, state_dim), jnp.float32)
    action_b, log_prob_b = lstm_forward(traj_b, params, pred_length, action_dim,
                                        action_max=action_max, batch_first=True,
                                        batch_tile=8)
    action_b = jax.block_until_ready(action_b)
    ref_b = lstm_reference(traj_b, params, pred_length, action_dim,
                           action_max=action_max, batch_first=True)
    assert action_b.shape == (batch, pred_length, action_dim)
    assert log_prob_b is None
    assert bool(jnp.all(jnp.abs(action_b) <= action_max + 1e-6))
    assert bool(jnp.allclose(action_b, ref_b, atol=2e-2, rtol=2e-2))

    print("KERNEL_OK")
</pallas_src>

<mosaic_0001>
module attributes {stable_mosaic.version = 11 : i64} {
  func.func @lstm_head_kernel(%arg0: memref<8x8x4xf32, #tpu.memory_space<vmem>>, %arg1: memref<4x512xbf16, #tpu.memory_space<vmem>>, %arg2: memref<128x512xbf16, #tpu.memory_space<vmem>>, %arg3: memref<1x512xf32, #tpu.memory_space<vmem>>, %arg4: memref<128x128xbf16, #tpu.memory_space<vmem>>, %arg5: memref<1x128xf32, #tpu.memory_space<vmem>>, %arg6: memref<8x128xf32, #tpu.memory_space<vmem>>, %arg7: memref<64x512xf32, #tpu.memory_space<vmem>>) attributes {dimension_semantics = [], scalar_prefetch = 0 : i64, scratch_operands = 1 : i64, tpu.core_type = #tpu.core_type<tc>} {
    %c0 = arith.constant 0 : index
    %c0_0 = arith.constant 0 : index
    %c0_1 = arith.constant 0 : index
    %0 = vector.load %arg0[%c0, %c0_0, %c0_1] : memref<8x8x4xf32, #tpu.memory_space<vmem>>, vector<8x8x4xf32>
    %1 = vector.shape_cast %0 : vector<8x8x4xf32> to vector<64x4xf32>
    %2 = arith.truncf %1 : vector<64x4xf32> to vector<64x4xbf16>
    %c0_2 = arith.constant 0 : index
    %c0_3 = arith.constant 0 : index
    %3 = vector.load %arg1[%c0_2, %c0_3] : memref<4x512xbf16, #tpu.memory_space<vmem>>, vector<4x512xbf16>
    %cst = arith.constant dense<0.000000e+00> : vector<64x512xf32>
    %4 = tpu.matmul %2, %3, %cst {dimension_numbers = #tpu.dot_dimension_numbers<[1], [0], [0], [1], [0, 0, 1, 1], [], []>} : vector<64x4xbf16>, vector<4x512xbf16>, vector<64x512xf32> -> vector<64x512xf32>
    %c0_4 = arith.constant 0 : index
    %c0_5 = arith.constant 0 : index
    %5 = vector.load %arg3[%c0_4, %c0_5] : memref<1x512xf32, #tpu.memory_space<vmem>>, vector<1x512xf32>
    %6 = vector.broadcast %5 : vector<1x512xf32> to vector<64x512xf32>
    %7 = arith.addf %4, %6 : vector<64x512xf32>
    %c0_6 = arith.constant 0 : index
    %c0_7 = arith.constant 0 : index
    %8 = vector.load %arg7[%c0_6, %c0_7] : memref<64x512xf32, #tpu.memory_space<vmem>>, vector<64x512xf32>
    tpu.vector_store %arg7[%c0_6, %c0_7], %7 {strides = array<i32>} : memref<64x512xf32, #tpu.memory_space<vmem>>, vector<64x512xf32>,
    %cst_8 = arith.constant 0.000000e+00 : f32
    %9 = vector.broadcast %cst_8 : f32 to vector<8x128xf32>
    %cst_9 = arith.constant 0.000000e+00 : f32
    %10 = vector.broadcast %cst_9 : f32 to vector<8x128xf32>
    %c0_10 = arith.constant 0 : index
    %c0_11 = arith.constant 0 : index
    %11 = vector.load %arg7[%c0_10, %c0_11] : memref<64x512xf32, #tpu.memory_space<vmem>>, vector<8x512xf32>
    %12 = arith.truncf %9 : vector<8x128xf32> to vector<8x128xbf16>
    %c0_12 = arith.constant 0 : index
    %c0_13 = arith.constant 0 : index
    %13 = vector.load %arg2[%c0_12, %c0_13] : memref<128x512xbf16, #tpu.memory_space<vmem>>, vector<128x512xbf16>
    %cst_14 = arith.constant dense<0.000000e+00> : vector<8x512xf32>
    %14 = tpu.matmul %12, %13, %cst_14 {dimension_numbers = #tpu.dot_dimension_numbers<[1], [0], [0], [1], [0, 0, 1, 1], [], []>} : vector<8x128xbf16>, vector<128x512xbf16>, vector<8x512xf32> -> vector<8x512xf32>
    %15 = arith.addf %11, %14 : vector<8x512xf32>
    %16 = vector.extract_strided_slice %15 {offsets = [0, 0], sizes = [8, 384], strides = [1, 1]} : vector<8x512xf32> to vector<8x384xf32>
    %17 = arith.negf %16 : vector<8x384xf32>
    %18 = math.exp %17 : vector<8x384xf32>
    %cst_15 = arith.constant 1.000000e+00 : f32
    %19 = vector.broadcast %cst_15 : f32 to vector<8x384xf32>
    %20 = arith.addf %19, %18 : vector<8x384xf32>
    %21 = arith.divf %19, %20 : vector<8x384xf32>
    %22 = vector.extract_strided_slice %15 {offsets = [0, 384], sizes = [8, 128], strides = [1, 1]} : vector<8x512xf32> to vector<8x128xf32>
    %23 = math.tanh %22 : vector<8x128xf32>
    %24 = vector.extract_strided_slice %21 {offsets = [0, 0], sizes = [8, 128], strides = [1, 1]} : vector<8x384xf32> to vector<8x128xf32>
    %25 = vector.extract_strided_slice %21 {offsets = [0, 128], sizes = [8, 128], strides = [1, 1]} : vector<8x384xf32> to vector<8x128xf32>
    %26 = vector.extract_strided_slice %21 {offsets = [0, 256], sizes = [8, 128], strides = [1, 1]} : vector<8x384xf32> to vector<8x128xf32>
    %27 = arith.mulf %25, %10 : vector<8x128xf32>
    %28 = arith.mulf %24, %23 : vector<8x128xf32>
    %29 = arith.addf %27, %28 : vector<8x128xf32>
    %30 = math.tanh %29 : vector<8x128xf32>
    %31 = arith.mulf %26, %30 : vector<8x128xf32>
    %c8 = arith.constant 8 : index
    %c0_16 = arith.constant 0 : index
    %32 = vector.load %arg7[%c8, %c0_16] : memref<64x512xf32, #tpu.memory_space<vmem>>, vector<8x512xf32>
    %33 = arith.truncf %31 : vector<8x128xf32> to vector<8x128xbf16>
    %c0_17 = arith.constant 0 : index
    %c0_18 = arith.constant 0 : index
    %34 = vector.load %arg2[%c0_17, %c0_18] : memref<128x512xbf16, #tpu.memory_space<vmem>>, vector<128x512xbf16>
    %cst_19 = arith.constant dense<0.000000e+00> : vector<8x512xf32>
    %35 = tpu.matmul %33, %34, %cst_19 {dimension_numbers = #tpu.dot_dimension_numbers<[1], [0], [0], [1], [0, 0, 1, 1], [], []>} : vector<8x128xbf16>, vector<128x512xbf16>, vector<8x512xf32> -> vector<8x512xf32>
    %36 = arith.addf %32, %35 : vector<8x512xf32>
    %37 = vector.extract_strided_slice %36 {offsets = [0, 0], sizes = [8, 384], strides = [1, 1]} : vector<8x512xf32> to vector<8x384xf32>
    %38 = arith.negf %37 : vector<8x384xf32>
    %39 = math.exp %38 : vector<8x384xf32>
    %cst_20 = arith.constant 1.000000e+00 : f32
    %40 = vector.broadcast %cst_20 : f32 to vector<8x384xf32>
    %41 = arith.addf %40, %39 : vector<8x384xf32>
    %42 = arith.divf %40, %41 : vector<8x384xf32>
    %43 = vector.extract_strided_slice %36 {offsets = [0, 384], sizes = [8, 128], strides = [1, 1]} : vector<8x512xf32> to vector<8x128xf32>
    %44 = math.tanh %43 : vector<8x128xf32>
    %45 = vector.extract_strided_slice %42 {offsets = [0, 0], sizes = [8, 128], strides = [1, 1]} : vector<8x384xf32> to vector<8x128xf32>
    %46 = vector.extract_strided_slice %42 {offsets = [0, 128], sizes = [8, 128], strides = [1, 1]} : vector<8x384xf32> to vector<8x128xf32>
    %47 = vector.extract_strided_slice %42 {offsets = [0, 256], sizes = [8, 128], strides = [1, 1]} : vector<8x384xf32> to vector<8x128xf32>
    %48 = arith.mulf %46, %29 : vector<8x128xf32>
    %49 = arith.mulf %45, %44 : vector<8x128xf32>
    %50 = arith.addf %48, %49 : vector<8x128xf32>
    %51 = math.tanh %50 : vector<8x128xf32>
    %52 = arith.mulf %47, %51 : vector<8x128xf32>
    %c16 = arith.constant 16 : index
    %c0_21 = arith.constant 0 : index
    %53 = vector.load %arg7[%c16, %c0_21] : memref<64x512xf32, #tpu.memory_space<vmem>>, vector<8x512xf32>
    %54 = arith.truncf %52 : vector<8x128xf32> to vector<8x128xbf16>
    %c0_22 = arith.constant 0 : index
    %c0_23 = arith.constant 0 : index
    %55 = vector.load %arg2[%c0_22, %c0_23] : memref<128x512xbf16, #tpu.memory_space<vmem>>, vector<128x512xbf16>
    %cst_24 = arith.constant dense<0.000000e+00> : vector<8x512xf32>
    %56 = tpu.matmul %54, %55, %cst_24 {dimension_numbers = #tpu.dot_dimension_numbers<[1], [0], [0], [1], [0, 0, 1, 1], [], []>} : vector<8x128xbf16>, vector<128x512xbf16>, vector<8x512xf32> -> vector<8x512xf32>
    %57 = arith.addf %53, %56 : vector<8x512xf32>
    %58 = vector.extract_strided_slice %57 {offsets = [0, 0], sizes = [8, 384], strides = [1, 1]} : vector<8x512xf32> to vector<8x384xf32>
    %59 = arith.negf %58 : vector<8x384xf32>
    %60 = math.exp %59 : vector<8x384xf32>
    %cst_25 = arith.constant 1.000000e+00 : f32
    %61 = vector.broadcast %cst_25 : f32 to vector<8x384xf32>
    %62 = arith.addf %61, %60 : vector<8x384xf32>
    %63 = arith.divf %61, %62 : vector<8x384xf32>
    %64 = vector.extract_strided_slice %57 {offsets = [0, 384], sizes = [8, 128], strides = [1, 1]} : vector<8x512xf32> to vector<8x128xf32>
    %65 = math.tanh %64 : vector<8x128xf32>
    %66 = vector.extract_strided_slice %63 {offsets = [0, 0], sizes = [8, 128], strides = [1, 1]} : vector<8x384xf32> to vector<8x128xf32>
    %67 = vector.extract_strided_slice %63 {offsets = [0, 128], sizes = [8, 128], strides = [1, 1]} : vector<8x384xf32> to vector<8x128xf32>
    %68 = vector.extract_strided_slice %63 {offsets = [0, 256], sizes = [8, 128], strides = [1, 1]} : vector<8x384xf32> to vector<8x128xf32>
    %69 = arith.mulf %67, %50 : vector<8x128xf32>
    %70 = arith.mulf %66, %65 : vector<8x128xf32>
    %71 = arith.addf %69, %70 : vector<8x128xf32>
    %72 = math.tanh %71 : vector<8x128xf32>
    %73 = arith.mulf %68, %72 : vector<8x128xf32>
    %c24 = arith.constant 24 : index
    %c0_26 = arith.constant 0 : index
    %74 = vector.load %arg7[%c24, %c0_26] : memref<64x512xf32, #tpu.memory_space<vmem>>, vector<8x512xf32>
    %75 = arith.truncf %73 : vector<8x128xf32> to vector<8x128xbf16>
    %c0_27 = arith.constant 0 : index
    %c0_28 = arith.constant 0 : index
    %76 = vector.load %arg2[%c0_27, %c0_28] : memref<128x512xbf16, #tpu.memory_space<vmem>>, vector<128x512xbf16>
    %cst_29 = arith.constant dense<0.000000e+00> : vector<8x512xf32>
    %77 = tpu.matmul %75, %76, %cst_29 {dimension_numbers = #tpu.dot_dimension_numbers<[1], [0], [0], [1], [0, 0, 1, 1], [], []>} : vector<8x128xbf16>, vector<128x512xbf16>, vector<8x512xf32> -> vector<8x512xf32>
    %78 = arith.addf %74, %77 : vector<8x512xf32>
    %79 = vector.extract_strided_slice %78 {offsets = [0, 0], sizes = [8, 384], strides = [1, 1]} : vector<8x512xf32> to vector<8x384xf32>
    %80 = arith.negf %79 : vector<8x384xf32>
    %81 = math.exp %80 : vector<8x384xf32>
    %cst_30 = arith.constant 1.000000e+00 : f32
    %82 = vector.broadcast %cst_30 : f32 to vector<8x384xf32>
    %83 = arith.addf %82, %81 : vector<8x384xf32>
    %84 = arith.divf %82, %83 : vector<8x384xf32>
    %85 = vector.extract_strided_slice %78 {offsets = [0, 384], sizes = [8, 128], strides = [1, 1]} : vector<8x512xf32> to vector<8x128xf32>
    %86 = math.tanh %85 : vector<8x128xf32>
    %87 = vector.extract_strided_slice %84 {offsets = [0, 0], sizes = [8, 128], strides = [1, 1]} : vector<8x384xf32> to vector<8x128xf32>
    %88 = vector.extract_strided_slice %84 {offsets = [0, 128], sizes = [8, 128], strides = [1, 1]} : vector<8x384xf32> to vector<8x128xf32>
    %89 = vector.extract_strided_slice %84 {offsets = [0, 256], sizes = [8, 128], strides = [1, 1]} : vector<8x384xf32> to vector<8x128xf32>
    %90 = arith.mulf %88, %71 : vector<8x128xf32>
    %91 = arith.mulf %87, %86 : vector<8x128xf32>
    %92 = arith.addf %90, %91 : vector<8x128xf32>
    %93 = math.tanh %92 : vector<8x128xf32>
    %94 = arith.mulf %89, %93 : vector<8x128xf32>
    %c32 = arith.constant 32 : index
    %c0_31 = arith.constant 0 : index
    %95 = vector.load %arg7[%c32, %c0_31] : memref<64x512xf32, #tpu.memory_space<vmem>>, vector<8x512xf32>
    %96 = arith.truncf %94 : vector<8x128xf32> to vector<8x128xbf16>
    %c0_32 = arith.constant 0 : index
    %c0_33 = arith.constant 0 : index
    %97 = vector.load %arg2[%c0_32, %c0_33] : memref<128x512xbf16, #tpu.memory_space<vmem>>, vector<128x512xbf16>
    %cst_34 = arith.constant dense<0.000000e+00> : vector<8x512xf32>
    %98 = tpu.matmul %96, %97, %cst_34 {dimension_numbers = #tpu.dot_dimension_numbers<[1], [0], [0], [1], [0, 0, 1, 1], [], []>} : vector<8x128xbf16>, vector<128x512xbf16>, vector<8x512xf32> -> vector<8x512xf32>
    %99 = arith.addf %95, %98 : vector<8x512xf32>
    %100 = vector.extract_strided_slice %99 {offsets = [0, 0], sizes = [8, 384], strides = [1, 1]} : vector<8x512xf32> to vector<8x384xf32>
    %101 = arith.negf %100 : vector<8x384xf32>
    %102 = math.exp %101 : vector<8x384xf32>
    %cst_35 = arith.constant 1.000000e+00 : f32
    %103 = vector.broadcast %cst_35 : f32 to vector<8x384xf32>
    %104 = arith.addf %103, %102 : vector<8x384xf32>
    %105 = arith.divf %103, %104 : vector<8x384xf32>
    %106 = vector.extract_strided_slice %99 {offsets = [0, 384], sizes = [8, 128], strides = [1, 1]} : vector<8x512xf32> to vector<8x128xf32>
    %107 = math.tanh %106 : vector<8x128xf32>
    %108 = vector.extract_strided_slice %105 {offsets = [0, 0], sizes = [8, 128], strides = [1, 1]} : vector<8x384xf32> to vector<8x128xf32>
    %109 = vector.extract_strided_slice %105 {offsets = [0, 128], sizes = [8, 128], strides = [1, 1]} : vector<8x384xf32> to vector<8x128xf32>
    %110 = vector.extract_strided_slice %105 {offsets = [0, 256], sizes = [8, 128], strides = [1, 1]} : vector<8x384xf32> to vector<8x128xf32>
    %111 = arith.mulf %109, %92 : vector<8x128xf32>
    %112 = arith.mulf %108, %107 : vector<8x128xf32>
    %113 = arith.addf %111, %112 : vector<8x128xf32>
    %114 = math.tanh %113 : vector<8x128xf32>
    %115 = arith.mulf %110, %114 : vector<8x128xf32>
    %c40 = arith.constant 40 : index
    %c0_36 = arith.constant 0 : index
    %116 = vector.load %arg7[%c40, %c0_36] : memref<64x512xf32, #tpu.memory_space<vmem>>, vector<8x512xf32>
    %117 = arith.truncf %115 : vector<8x128xf32> to vector<8x128xbf16>
    %c0_37 = arith.constant 0 : index
    %c0_38 = arith.constant 0 : index
    %118 = vector.load %arg2[%c0_37, %c0_38] : memref<128x512xbf16, #tpu.memory_space<vmem>>, vector<128x512xbf16>
    %cst_39 = arith.constant dense<0.000000e+00> : vector<8x512xf32>
    %119 = tpu.matmul %117, %118, %cst_39 {dimension_numbers = #tpu.dot_dimension_numbers<[1], [0], [0], [1], [0, 0, 1, 1], [], []>} : vector<8x128xbf16>, vector<128x512xbf16>, vector<8x512xf32> -> vector<8x512xf32>
    %120 = arith.addf %116, %119 : vector<8x512xf32>
    %121 = vector.extract_strided_slice %120 {offsets = [0, 0], sizes = [8, 384], strides = [1, 1]} : vector<8x512xf32> to vector<8x384xf32>
    %122 = arith.negf %121 : vector<8x384xf32>
    %123 = math.exp %122 : vector<8x384xf32>
    %cst_40 = arith.constant 1.000000e+00 : f32
    %124 = vector.broadcast %cst_40 : f32 to vector<8x384xf32>
    %125 = arith.addf %124, %123 : vector<8x384xf32>
    %126 = arith.divf %124, %125 : vector<8x384xf32>
    %127 = vector.extract_strided_slice %120 {offsets = [0, 384], sizes = [8, 128], strides = [1, 1]} : vector<8x512xf32> to vector<8x128xf32>
    %128 = math.tanh %127 : vector<8x128xf32>
    %129 = vector.extract_strided_slice %126 {offsets = [0, 0], sizes = [8, 128], strides = [1, 1]} : vector<8x384xf32> to vector<8x128xf32>
    %130 = vector.extract_strided_slice %126 {offsets = [0, 128], sizes = [8, 128], strides = [1, 1]} : vector<8x384xf32> to vector<8x128xf32>
    %131 = vector.extract_strided_slice %126 {offsets = [0, 256], sizes = [8, 128], strides = [1, 1]} : vector<8x384xf32> to vector<8x128xf32>
    %132 = arith.mulf %130, %113 : vector<8x128xf32>
    %133 = arith.mulf %129, %128 : vector<8x128xf32>
    %134 = arith.addf %132, %133 : vector<8x128xf32>
    %135 = math.tanh %134 : vector<8x128xf32>
    %136 = arith.mulf %131, %135 : vector<8x128xf32>
    %c48 = arith.constant 48 : index
    %c0_41 = arith.constant 0 : index
    %137 = vector.load %arg7[%c48, %c0_41] : memref<64x512xf32, #tpu.memory_space<vmem>>, vector<8x512xf32>
    %138 = arith.truncf %136 : vector<8x128xf32> to vector<8x128xbf16>
    %c0_42 = arith.constant 0 : index
    %c0_43 = arith.constant 0 : index
    %139 = vector.load %arg2[%c0_42, %c0_43] : memref<128x512xbf16, #tpu.memory_space<vmem>>, vector<128x512xbf16>
    %cst_44 = arith.constant dense<0.000000e+00> : vector<8x512xf32>
    %140 = tpu.matmul %138, %139, %cst_44 {dimension_numbers = #tpu.dot_dimension_numbers<[1], [0], [0], [1], [0, 0, 1, 1], [], []>} : vector<8x128xbf16>, vector<128x512xbf16>, vector<8x512xf32> -> vector<8x512xf32>
    %141 = arith.addf %137, %140 : vector<8x512xf32>
    %142 = vector.extract_strided_slice %141 {offsets = [0, 0], sizes = [8, 384], strides = [1, 1]} : vector<8x512xf32> to vector<8x384xf32>
    %143 = arith.negf %142 : vector<8x384xf32>
    %144 = math.exp %143 : vector<8x384xf32>
    %cst_45 = arith.constant 1.000000e+00 : f32
    %145 = vector.broadcast %cst_45 : f32 to vector<8x384xf32>
    %146 = arith.addf %145, %144 : vector<8x384xf32>
    %147 = arith.divf %145, %146 : vector<8x384xf32>
    %148 = vector.extract_strided_slice %141 {offsets = [0, 384], sizes = [8, 128], strides = [1, 1]} : vector<8x512xf32> to vector<8x128xf32>
    %149 = math.tanh %148 : vector<8x128xf32>
    %150 = vector.extract_strided_slice %147 {offsets = [0, 0], sizes = [8, 128], strides = [1, 1]} : vector<8x384xf32> to vector<8x128xf32>
    %151 = vector.extract_strided_slice %147 {offsets = [0, 128], sizes = [8, 128], strides = [1, 1]} : vector<8x384xf32> to vector<8x128xf32>
    %152 = vector.extract_strided_slice %147 {offsets = [0, 256], sizes = [8, 128], strides = [1, 1]} : vector<8x384xf32> to vector<8x128xf32>
    %153 = arith.mulf %151, %134 : vector<8x128xf32>
    %154 = arith.mulf %150, %149 : vector<8x128xf32>
    %155 = arith.addf %153, %154 : vector<8x128xf32>
    %156 = math.tanh %155 : vector<8x128xf32>
    %157 = arith.mulf %152, %156 : vector<8x128xf32>
    %c56 = arith.constant 56 : index
    %c0_46 = arith.constant 0 : index
    %158 = vector.load %arg7[%c56, %c0_46] : memref<64x512xf32, #tpu.memory_space<vmem>>, vector<8x512xf32>
    %159 = arith.truncf %157 : vector<8x128xf32> to vector<8x128xbf16>
    %c0_47 = arith.constant 0 : index
    %c0_48 = arith.constant 0 : index
    %160 = vector.load %arg2[%c0_47, %c0_48] : memref<128x512xbf16, #tpu.memory_space<vmem>>, vector<128x512xbf16>
    %cst_49 = arith.constant dense<0.000000e+00> : vector<8x512xf32>
    %161 = tpu.matmul %159, %160, %cst_49 {dimension_numbers = #tpu.dot_dimension_numbers<[1], [0], [0], [1], [0, 0, 1, 1], [], []>} : vector<8x128xbf16>, vector<128x512xbf16>, vector<8x512xf32> -> vector<8x512xf32>
    %162 = arith.addf %158, %161 : vector<8x512xf32>
    %163 = vector.extract_strided_slice %162 {offsets = [0, 0], sizes = [8, 384], strides = [1, 1]} : vector<8x512xf32> to vector<8x384xf32>
    %164 = arith.negf %163 : vector<8x384xf32>
    %165 = math.exp %164 : vector<8x384xf32>
    %cst_50 = arith.constant 1.000000e+00 : f32
    %166 = vector.broadcast %cst_50 : f32 to vector<8x384xf32>
    %167 = arith.addf %166, %165 : vector<8x384xf32>
    %168 = arith.divf %166, %167 : vector<8x384xf32>
    %169 = vector.extract_strided_slice %162 {offsets = [0, 384], sizes = [8, 128], strides = [1, 1]} : vector<8x512xf32> to vector<8x128xf32>
    %170 = math.tanh %169 : vector<8x128xf32>
    %171 = vector.extract_strided_slice %168 {offsets = [0, 0], sizes = [8, 128], strides = [1, 1]} : vector<8x384xf32> to vector<8x128xf32>
    %172 = vector.extract_strided_slice %168 {offsets = [0, 128], sizes = [8, 128], strides = [1, 1]} : vector<8x384xf32> to vector<8x128xf32>
    %173 = vector.extract_strided_slice %168 {offsets = [0, 256], sizes = [8, 128], strides = [1, 1]} : vector<8x384xf32> to vector<8x128xf32>
    %174 = arith.mulf %172, %155 : vector<8x128xf32>
    %175 = arith.mulf %171, %170 : vector<8x128xf32>
    %176 = arith.addf %174, %175 : vector<8x128xf32>
    %177 = math.tanh %176 : vector<8x128xf32>
    %178 = arith.mulf %173, %177 : vector<8x128xf32>
    %179 = arith.truncf %178 : vector<8x128xf32> to vector<8x128xbf16>
    %c0_51 = arith.constant 0 : index
    %c0_52 = arith.constant 0 : index
    %180 = vector.load %arg4[%c0_51, %c0_52] : memref<128x128xbf16, #tpu.memory_space<vmem>>, vector<128x128xbf16>
    %cst_53 = arith.constant dense<0.000000e+00> : vector<8x128xf32>
    %181 = tpu.matmul %179, %180, %cst_53 {dimension_numbers = #tpu.dot_dimension_numbers<[1], [0], [0], [1], [0, 0, 1, 1], [], []>} : vector<8x128xbf16>, vector<128x128xbf16>, vector<8x128xf32> -> vector<8x128xf32>
    %c0_54 = arith.constant 0 : index
    %c0_55 = arith.constant 0 : index
    %182 = vector.load %arg5[%c0_54, %c0_55] : memref<1x128xf32, #tpu.memory_space<vmem>>, vector<1x128xf32>
    %183 = vector.broadcast %182 : vector<1x128xf32> to vector<8x128xf32>
    %184 = arith.addf %181, %183 : vector<8x128xf32>
    %cst_56 = arith.constant -1.000000e+00 : f32
    %cst_57 = arith.constant 1.000000e+00 : f32
    %185 = vector.broadcast %cst_56 : f32 to vector<8x128xf32>
    %186 = arith.maximumf %185, %184 : vector<8x128xf32>
    %187 = vector.broadcast %cst_57 : f32 to vector<8x128xf32>
    %188 = arith.minimumf %187, %186 : vector<8x128xf32>
    %c0_58 = arith.constant 0 : index
    %c0_59 = arith.constant 0 : index
    %189 = vector.load %arg6[%c0_58, %c0_59] : memref<8x128xf32, #tpu.memory_space<vmem>>, vector<8x128xf32>
    tpu.vector_store %arg6[%c0_58, %c0_59], %188 {strides = array<i32>} : memref<8x128xf32, #tpu.memory_space<vmem>>, vector<8x128xf32>,
    return
  }
}

</mosaic_0001>

<llo_original>
// kernel: tpu_custom_call.1
$region0: #{tpu_custom_call.1}
  #allocation0 [shape = 'u32[]', space=smem, size = 0x4, offset = 0x4, fixed_abs, tag = 'smem constant byte address 0x4 - core index']
  #allocation1 [shape = 'u32[144,128]{1,0:T(1,128)}', space=vmem, size = 0x12000, scoped, tag = 'internal scratch']
  #allocation2 [shape = 'f32[64,512]{1,0:T(8,128)}', space=vmem, size = 0x20000, scoped, tag = 'scratch operand']
  %s0 = inlined_call_operand.vmem [shape: f32[8,8,4], index: 0, kind: input, shape index: {}]
  %s1 = inlined_call_operand.vmem [shape: bf16[4,512], index: 1, kind: input, shape index: {}]
  %s2 = inlined_call_operand.hbm [shape: bf16[128,512], index: 2, kind: input, shape index: {}]
  %s3 = inlined_call_operand.vmem [shape: f32[1,512], index: 3, kind: input, shape index: {}]
  %s4 = inlined_call_operand.vmem [shape: bf16[128,128], index: 4, kind: input, shape index: {}]
  %s5 = inlined_call_operand.vmem [shape: f32[1,128], index: 5, kind: input, shape index: {}]
  %s6 = inlined_call_operand.hbm [shape: f32[8,128], index: 6, kind: output, shape index: {}]
  %s7 = sld [smem:[#allocation0]]
  $region38: #{tpu_custom_call.1} parent=0
    _
  %s9 = ssub.s32 1, %s7
  %s10 = scalar_select 0, %s9, %s7
  $region1: #{tpu_custom_call.1} parent=0
    #allocation3 [shape = 'u8[131072]{0}', space=vmem, size = 0x20000, scoped, tag = 'input window, operand 2, single buffered']
    #allocation4 [shape = 's32[1]{0}', space=sflag, size = 0x4, scoped, tag = 'scoped memory for tpu_custom_call.1']
    #allocation5 [shape = 's32[1]{0}', space=sflag, size = 0x4, scoped, tag = 'scoped memory for tpu_custom_call.1']
    #allocation6 [shape = 'u8[4096]{0}', space=vmem, size = 0x1000, scoped, tag = 'output window, operand 0, single buffered']
    %11 = vsyncpa [#allocation4], 0
    %12 = vsyncpa [#allocation5], 0
    // Predicated region
    $region2: #{tpu_custom_call.1} parent=1 // pred_check
      _
    $region3: #{tpu_custom_call.1} parent=1 // pred_check_branch
      %14 = sbr.rel (0) target = $region5
    $region4: #{tpu_custom_call.1} parent=1 // pred_region
      _
    $region5: #{tpu_custom_call.1} parent=1 // pred_fallthru
      _
    // Predicated region
    $region6: #{tpu_custom_call.1} parent=1 // pred_check
      _
    $region7: #{tpu_custom_call.1} parent=1 // pred_check_branch
      %16 = sbr.rel (0) target = $region9
    $region8: #{tpu_custom_call.1} parent=1 // pred_region
      _
    $region9: #{tpu_custom_call.1} parent=1 // pred_fallthru
      _
    // Predicated region
    $region10: #{tpu_custom_call.1} parent=1 // pred_check
      _
    $region11: #{tpu_custom_call.1} parent=1 // pred_check_branch
      %18 = sbr.rel (0) target = $region13
    $region12: #{tpu_custom_call.1} parent=1 // pred_region
      %s20 = ssub.s32 4096, 4096
      %21 = vsyncadd [#allocation4], %s20
      %s22 = sshll.u32 [#allocation3], 4
      %s23 = int_to_ptr.vmem [resolvable:$true] %s22
      %28 = dma.hbm_to_vmem [thread:$0]  %s2, 4096, %s23, [#allocation4], 256, 256, 16
    $region13: #{tpu_custom_call.1} parent=1 // pred_fallthru
      _
    // Predicated region
    $region14: #{tpu_custom_call.1} parent=1 // pred_check
      _
    $region15: #{tpu_custom_call.1} parent=1 // pred_check_branch
      %30 = sbr.rel (0) target = $region17
    $region16: #{tpu_custom_call.1} parent=1 // pred_region
      _
    $region17: #{tpu_custom_call.1} parent=1 // pred_fallthru
      _
    // Predicated region
    $region18: #{tpu_custom_call.1} parent=1 // pred_check
      _
    $region19: #{tpu_custom_call.1} parent=1 // pred_check_branch
      %32 = sbr.rel (0) target = $region21
    $region20: #{tpu_custom_call.1} parent=1 // pred_region
      _
    $region21: #{tpu_custom_call.1} parent=1 // pred_fallthru
      _
    // Predicated region
    $region22: #{tpu_custom_call.1} parent=1 // pred_check
      _
    $region23: #{tpu_custom_call.1} parent=1 // pred_check_branch
      %34 = sbr.rel (0) target = $region25
    $region24: #{tpu_custom_call.1} parent=1 // pred_region
      _
    $region25: #{tpu_custom_call.1} parent=1 // pred_fallthru
      _
    // Predicated region
    $region26: #{tpu_custom_call.1} parent=1 // pred_check
      _
    $region27: #{tpu_custom_call.1} parent=1 // pred_check_branch
      %36 = sbr.rel (0) target = $region29
    $region28: #{tpu_custom_call.1} parent=1 // pred_region
      %37 = dma.done [#allocation4], 4096
    $region29: #{tpu_custom_call.1} parent=1 // pred_fallthru
      _
    %v39 = vld [vmem:[%s0] sm:$0xff]
    %v40 = vld [vmem:[%s0 + $0x8] sm:$0xff]
    %v41 = vld [vmem:[%s0 + $0x10] sm:$0xff]
    %v42 = vld [vmem:[%s0 + $0x18] sm:$0xff]
    %v43 = vld [vmem:[%s0 + $0x20] sm:$0xff]
    %v44 = vld [vmem:[%s0 + $0x28] sm:$0xff]
    %v45 = vld [vmem:[%s0 + $0x30] sm:$0xff]
    %v46 = vld [vmem:[%s0 + $0x38] sm:$0xff]
    %v47 = vpack.c.bf16 %v40, %v39
    %v48 = vpack.c.bf16 %v42, %v41
    %v49 = vpack.c.bf16 %v44, %v43
    %v50 = vpack.c.bf16 %v46, %v45
    %v51 = vld [vmem:[%s1] sm:$0xff]
    %v52 = vld [vmem:[%s3] sm:$0xf]
    %v54 = vlaneseq
    %v55 = vshrl.u32 %v54, 7
    %v56 = vsub.s32 0, %v55
    %v57 = vrot.slane %v52, %v56
    %v58 = vlaneseq
    %v59 = vshrl.u32 %v58, 7
    %v60 = vsub.s32 1, %v59
    %v61 = vrot.slane %v52, %v60
    %v62 = vlaneseq
    %v63 = vshrl.u32 %v62, 7
    %v64 = vsub.s32 2, %v63
    %v65 = vrot.slane %v52, %v64
    %v66 = vlaneseq
    %v67 = vshrl.u32 %v66, 7
    %v68 = vsub.s32 3, %v67
    %v69 = vrot.slane %v52, %v68
    %v75 = vcombine.high %v51, %v51
    %v77 = vunpack.c.l.s4 1983009808
    %v78 = vunpack.c.0.s8 %v77
    %v79 = vlaneseq
    %v80 = vshrl.u32 %v79, 7
    %v81 = vsub.s32 %v78, %v80
    %v82 = vrot.slane %v51, %v81
    %v84 = vunpack.c.l.s4 1983009808
    %v85 = vunpack.c.0.s8 %v84
    %v86 = vlaneseq
    %v87 = vshrl.u32 %v86, 7
    %v88 = vsub.s32 %v85, %v87
    %v89 = vrot.slane %v75, %v88
    %v90 = vcombine.high %v82, %v82
    %v91 = vcombine.high %v89, %v89
    %vm92 = vcmask 31744
    %v94 = vsel %vm92, %v47, 0
    %v97 = vsel %vm92, %v48, 0
    %v100 = vsel %vm92, %v49, 0
    %v103 = vsel %vm92, %v50, 0
    %vm105 = vcmask 1041408
    %v107 = vsel %vm105, %v82, 0
    %v110 = vsel %vm105, %v90, 0
    %v113 = vsel %vm105, %v89, 0
    %v116 = vsel %vm105, %v91, 0
    %118 = vmatprep.subr.bf16.mxu0 %v110
    %119 = vmatpush1.bf16.msra.mxu0 %v107
    %120 = vmatprep.subr.bf16.mxu0 0
    %121 = vmatpush1.bf16.msra.mxu0 0
    %122 = vmatprep.subr.bf16.mxu0 0
    %123 = vmatpush1.bf16.msra.mxu0 0
    %124 = vmatprep.subr.bf16.mxu0 0
    %125 = vmatpush1.bf16.msra.mxu0 0
    %126 = vmatprep.subr.bf16.mxu0 0
    %127 = vmatpush1.bf16.msra.mxu0 0
    %128 = vmatprep.subr.bf16.mxu0 0
    %129 = vmatpush1.bf16.msra.mxu0 0
    %130 = vmatprep.subr.bf16.mxu0 0
    %131 = vmatpush1.bf16.msra.mxu0 0
    %132 = vmatprep.subr.bf16.mxu0 0
    %133 = vmatpush1.bf16.msra.mxu0 0
    %134 = vmatprep.subr.bf16.mxu0 0
    %135 = vmatpush1.bf16.msra.mxu0 0
    %136 = vmatprep.subr.bf16.mxu0 0
    %137 = vmatpush1.bf16.msra.mxu0 0
    %138 = vmatprep.subr.bf16.mxu0 0
    %139 = vmatpush1.bf16.msra.mxu0 0
    %140 = vmatprep.subr.bf16.mxu0 0
    %141 = vmatpush1.bf16.msra.mxu0 0
    %142 = vmatprep.subr.bf16.mxu0 0
    %143 = vmatpush1.bf16.msra.mxu0 0
    %144 = vmatprep.subr.bf16.mxu0 0
    %145 = vmatpush1.bf16.msra.mxu0 0
    %146 = vmatprep.subr.bf16.mxu0 0
    %147 = vmatpush1.bf16.msra.mxu0 0
    %148 = vmatprep.subr.bf16.mxu0 0
    %149 = vmatpush1.bf16.msra.mxu0 0
    %150 = vmatprep.mubr.bf16.mxu0 0
    %151 = vmatmul.mubr.bf16.gmra.mrb[0].mxu0 %v94
    %v152 = vpop.f32.mrb[0].mxu0
    %v153 = vadd.f32 %v57, %v152
    %v154 = vpop.f32.mrb[0].mxu0
    %v155 = vadd.f32 %v61, %v154
    %v156 = vpop.f32.mrb[0].mxu0
    %v157 = vadd.f32 %v57, %v156
    %v158 = vpop.f32.mrb[0].mxu0
    %v159 = vadd.f32 %v61, %v158
    %160 = vmatprep.mubr.bf16.mxu0 0
    %161 = vmatmul.mubr.bf16.gmra.mrb[0].mxu0 %v97
    %v162 = vpop.f32.mrb[0].mxu0
    %v163 = vadd.f32 %v57, %v162
    %v164 = vpop.f32.mrb[0].mxu0
    %v165 = vadd.f32 %v61, %v164
    %v166 = vpop.f32.mrb[0].mxu0
    %v167 = vadd.f32 %v57, %v166
    %v168 = vpop.f32.mrb[0].mxu0
    %v169 = vadd.f32 %v61, %v168
    %170 = vmatprep.mubr.bf16.mxu0 0
    %171 = vmatmul.mubr.bf16.gmra.mrb[0].mxu0 %v100
    %v172 = vpop.f32.mrb[0].mxu0
    %v173 = vadd.f32 %v57, %v172
    %v174 = vpop.f32.mrb[0].mxu0
    %v175 = vadd.f32 %v61, %v174
    %v176 = vpop.f32.mrb[0].mxu0
    %v177 = vadd.f32 %v57, %v176
    %v178 = vpop.f32.mrb[0].mxu0
    %v179 = vadd.f32 %v61, %v178
    %180 = vmatprep.mubr.bf16.mxu0 0
    %181 = vmatmul.mubr.bf16.gmra.mrb[0].mxu0 %v103
    %v182 = vpop.f32.mrb[0].mxu0
    %v183 = vadd.f32 %v57, %v182
    %v184 = vpop.f32.mrb[0].mxu0
    %v185 = vadd.f32 %v61, %v184
    %v186 = vpop.f32.mrb[0].mxu0
    %v187 = vadd.f32 %v57, %v186
    %v188 = vpop.f32.mrb[0].mxu0
    %v189 = vadd.f32 %v61, %v188
    %190 = vdwg.mxu0
    %191 = vmatprep.subr.bf16.mxu0 %v116
    %192 = vmatpush1.bf16.msra.mxu0 %v113
    %193 = vmatprep.subr.bf16.mxu0 0
    %194 = vmatpush1.bf16.msra.mxu0 0
    %195 = vmatprep.subr.bf16.mxu0 0
    %196 = vmatpush1.bf16.msra.mxu0 0
    %197 = vmatprep.subr.bf16.mxu0 0
    %198 = vmatpush1.bf16.msra.mxu0 0
    %199 = vmatprep.subr.bf16.mxu0 0
    %200 = vmatpush1.bf16.msra.mxu0 0
    %201 = vmatprep.subr.bf16.mxu0 0
    %202 = vmatpush1.bf16.msra.mxu0 0
    %203 = vmatprep.subr.bf16.mxu0 0
    %204 = vmatpush1.bf16.msra.mxu0 0
    %205 = vmatprep.subr.bf16.mxu0 0
    %206 = vmatpush1.bf16.msra.mxu0 0
    %207 = vmatprep.subr.bf16.mxu0 0
    %208 = vmatpush1.bf16.msra.mxu0 0
    %209 = vmatprep.subr.bf16.mxu0 0
    %210 = vmatpush1.bf16.msra.mxu0 0
    %211 = vmatprep.subr.bf16.mxu0 0
    %212 = vmatpush1.bf16.msra.mxu0 0
    %213 = vmatprep.subr.bf16.mxu0 0
    %214 = vmatpush1.bf16.msra.mxu0 0
    %215 = vmatprep.subr.bf16.mxu0 0
    %216 = vmatpush1.bf16.msra.mxu0 0
    %217 = vmatprep.subr.bf16.mxu0 0
    %218 = vmatpush1.bf16.msra.mxu0 0
    %219 = vmatprep.subr.bf16.mxu0 0
    %220 = vmatpush1.bf16.msra.mxu0 0
    %221 = vmatprep.subr.bf16.mxu0 0
    %222 = vmatpush1.bf16.msra.mxu0 0
    %223 = vmatprep.mubr.bf16.mxu0 0
    %224 = vmatmul.mubr.bf16.gmra.mrb[0].mxu0 %v94
    %v225 = vpop.f32.mrb[0].mxu0
    %v226 = vadd.f32 %v65, %v225
    %v227 = vpop.f32.mrb[0].mxu0
    %v228 = vadd.f32 %v69, %v227
    %v229 = vpop.f32.mrb[0].mxu0
    %v230 = vadd.f32 %v65, %v229
    %v231 = vpop.f32.mrb[0].mxu0
    %v232 = vadd.f32 %v69, %v231
    %233 = vmatprep.mubr.bf16.mxu0 0
    %234 = vmatmul.mubr.bf16.gmra.mrb[0].mxu0 %v97
    %v235 = vpop.f32.mrb[0].mxu0
    %v236 = vadd.f32 %v65, %v235
    %v237 = vpop.f32.mrb[0].mxu0
    %v238 = vadd.f32 %v69, %v237
    %v239 = vpop.f32.mrb[0].mxu0
    %v240 = vadd.f32 %v65, %v239
    %v241 = vpop.f32.mrb[0].mxu0
    %v242 = vadd.f32 %v69, %v241
    %243 = vmatprep.mubr.bf16.mxu0 0
    %244 = vmatmul.mubr.bf16.gmra.mrb[0].mxu0 %v100
    %v245 = vpop.f32.mrb[0].mxu0
    %v246 = vadd.f32 %v65, %v245
    %v247 = vpop.f32.mrb[0].mxu0
    %v248 = vadd.f32 %v69, %v247
    %v249 = vpop.f32.mrb[0].mxu0
    %v250 = vadd.f32 %v65, %v249
    %v251 = vpop.f32.mrb[0].mxu0
    %v252 = vadd.f32 %v69, %v251
    %253 = vmatprep.mubr.bf16.mxu0 0
    %254 = vmatmul.mubr.bf16.gmra.mrb[0].mxu0 %v103
    %v255 = vpop.f32.mrb[0].mxu0
    %v256 = vadd.f32 %v65, %v255
    %v257 = vpop.f32.mrb[0].mxu0
    %v258 = vadd.f32 %v69, %v257
    %v259 = vpop.f32.mrb[0].mxu0
    %v260 = vadd.f32 %v65, %v259
    %v261 = vpop.f32.mrb[0].mxu0
    %v262 = vadd.f32 %v69, %v261
    %263 = vdwg.mxu0
    %264 = vst [vmem:[#allocation2] sm:$0xff] %v153
    %265 = vst [vmem:[#allocation2 + $0x8] sm:$0xff] %v155
    %266 = vst [vmem:[#allocation2 + $0x10] sm:$0xff] %v226
    %267 = vst [vmem:[#allocation2 + $0x18] sm:$0xff] %v228
    %268 = vst [vmem:[#allocation2 + $0x20] sm:$0xff] %v157
    %269 = vst [vmem:[#allocation2 + $0x28] sm:$0xff] %v159
    %270 = vst [vmem:[#allocation2 + $0x30] sm:$0xff] %v230
    %271 = vst [vmem:[#allocation2 + $0x38] sm:$0xff] %v232
    %272 = vst [vmem:[#allocation2 + $0x40] sm:$0xff] %v163
    %273 = vst [vmem:[#allocation2 + $0x48] sm:$0xff] %v165
    %274 = vst [vmem:[#allocation2 + $0x50] sm:$0xff] %v236
    %275 = vst [vmem:[#allocation2 + $0x58] sm:$0xff] %v238
    %276 = vst [vmem:[#allocation2 + $0x60] sm:$0xff] %v167
    %277 = vst [vmem:[#allocation2 + $0x68] sm:$0xff] %v169
    %278 = vst [vmem:[#allocation2 + $0x70] sm:$0xff] %v240
    %279 = vst [vmem:[#allocation2 + $0x78] sm:$0xff] %v242
    %280 = vst [vmem:[#allocation2 + $0x80] sm:$0xff] %v173
    %281 = vst [vmem:[#allocation2 + $0x88] sm:$0xff] %v175
    %282 = vst [vmem:[#allocation2 + $0x90] sm:$0xff] %v246
    %283 = vst [vmem:[#allocation2 + $0x98] sm:$0xff] %v248
    %284 = vst [vmem:[#allocation2 + $0xa0] sm:$0xff] %v177
    %285 = vst [vmem:[#allocation2 + $0xa8] sm:$0xff] %v179
    %286 = vst [vmem:[#allocation2 + $0xb0] sm:$0xff] %v250
    %287 = vst [vmem:[#allocation2 + $0xb8] sm:$0xff] %v252
    %288 = vst [vmem:[#allocation2 + $0xc0] sm:$0xff] %v183
    %289 = vst [vmem:[#allocation2 + $0xc8] sm:$0xff] %v185
    %290 = vst [vmem:[#allocation2 + $0xd0] sm:$0xff] %v256
    %291 = vst [vmem:[#allocation2 + $0xd8] sm:$0xff] %v258
    %292 = vst [vmem:[#allocation2 + $0xe0] sm:$0xff] %v187
    %293 = vst [vmem:[#allocation2 + $0xe8] sm:$0xff] %v189
    %294 = vst [vmem:[#allocation2 + $0xf0] sm:$0xff] %v260
    %295 = vst [vmem:[#allocation2 + $0xf8] sm:$0xff] %v262
    %v296 = vld [vmem:[#allocation2] sm:$0xff]
    %v297 = vld [vmem:[#allocation2 + $0x8] sm:$0xff]
    %v298 = vld [vmem:[#allocation2 + $0x10] sm:$0xff]
    %v299 = vld [vmem:[#allocation2 + $0x18] sm:$0xff]
    %v300 = vld [vmem:[#allocation3] sm:$0xff]
    %v301 = vld [vmem:[#allocation3 + $0x8] sm:$0xff]
    %v302 = vld [vmem:[#allocation3 + $0x10] sm:$0xff]
    %v303 = vld [vmem:[#allocation3 + $0x18] sm:$0xff]
    %v304 = vld [vmem:[#allocation3 + $0x20] sm:$0xff]
    %v305 = vld [vmem:[#allocation3 + $0x28] sm:$0xff]
    %v306 = vld [vmem:[#allocation3 + $0x30] sm:$0xff]
    %v307 = vld [vmem:[#allocation3 + $0x38] sm:$0xff]
    %v308 = vld [vmem:[#allocation3 + $0x40] sm:$0xff]
    %v309 = vld [vmem:[#allocation3 + $0x48] sm:$0xff]
    %v310 = vld [vmem:[#allocation3 + $0x50] sm:$0xff]
    %v311 = vld [vmem:[#allocation3 + $0x58] sm:$0xff]
    %v312 = vld [vmem:[#allocation3 + $0x60] sm:$0xff]
    %v313 = vld [vmem:[#allocation3 + $0x68] sm:$0xff]
    %v314 = vld [vmem:[#allocation3 + $0x70] sm:$0xff]
    %v315 = vld [vmem:[#allocation3 + $0x78] sm:$0xff]
    %v316 = vld [vmem:[#allocation3 + $0x80] sm:$0xff]
    %v317 = vld [vmem:[#allocation3 + $0x88] sm:$0xff]
    %v318 = vld [vmem:[#allocation3 + $0x90] sm:$0xff]
    %v319 = vld [vmem:[#allocation3 + $0x98] sm:$0xff]
    %v320 = vld [vmem:[#allocation3 + $0xa0] sm:$0xff]
    %v321 = vld [vmem:[#allocation3 + $0xa8] sm:$0xff]
    %v322 = vld [vmem:[#allocation3 + $0xb0] sm:$0xff]
    %v323 = vld [vmem:[#allocation3 + $0xb8] sm:$0xff]
    %v324 = vld [vmem:[#allocation3 + $0xc0] sm:$0xff]
    %v325 = vld [vmem:[#allocation3 + $0xc8] sm:$0xff]
    %v326 = vld [vmem:[#allocation3 + $0xd0] sm:$0xff]
    %v327 = vld [vmem:[#allocation3 + $0xd8] sm:$0xff]
    %v328 = vld [vmem:[#allocation3 + $0xe0] sm:$0xff]
    %v329 = vld [vmem:[#allocation3 + $0xe8] sm:$0xff]
    %v330 = vld [vmem:[#allocation3 + $0xf0] sm:$0xff]
    %v331 = vld [vmem:[#allocation3 + $0xf8] sm:$0xff]
    %v364 = vunpack.c.l.b16 %v300
    %v365 = vunpack.c.h.b16 %v300
    %v366 = vunpack.c.l.b16 %v301
    %v367 = vunpack.c.h.b16 %v301
    %v368 = vunpack.c.l.b16 %v302
    %v369 = vunpack.c.h.b16 %v302
    %v370 = vunpack.c.l.b16 %v303
    %v371 = vunpack.c.h.b16 %v303
    %v372 = vunpack.c.l.b16 %v304
    %v373 = vunpack.c.h.b16 %v304
    %v374 = vunpack.c.l.b16 %v305
    %v375 = vunpack.c.h.b16 %v305
    %v376 = vunpack.c.l.b16 %v306
    %v377 = vunpack.c.h.b16 %v306
    %v378 = vunpack.c.l.b16 %v307
    %v379 = vunpack.c.h.b16 %v307
    %v380 = vunpack.c.l.b16 %v308
    %v381 = vunpack.c.h.b16 %v308
    %v382 = vunpack.c.l.b16 %v309
    %v383 = vunpack.c.h.b16 %v309
    %v384 = vunpack.c.l.b16 %v310
    %v385 = vunpack.c.h.b16 %v310
    %v386 = vunpack.c.l.b16 %v311
    %v387 = vunpack.c.h.b16 %v311
    %v388 = vunpack.c.l.b16 %v312
    %v389 = vunpack.c.h.b16 %v312
    %v390 = vunpack.c.l.b16 %v313
    %v391 = vunpack.c.h.b16 %v313
    %v392 = vunpack.c.l.b16 %v314
    %v393 = vunpack.c.h.b16 %v314
    %v394 = vunpack.c.l.b16 %v315
    %v395 = vunpack.c.h.b16 %v315
    %v396 = vunpack.c.l.b16 %v316
    %v397 = vunpack.c.h.b16 %v316
    %v398 = vunpack.c.l.b16 %v317
    %v399 = vunpack.c.h.b16 %v317
    %v400 = vunpack.c.l.b16 %v318
    %v401 = vunpack.c.h.b16 %v318
    %v402 = vunpack.c.l.b16 %v319
    %v403 = vunpack.c.h.b16 %v319
    %v404 = vunpack.c.l.b16 %v320
    %v405 = vunpack.c.h.b16 %v320
    %v406 = vunpack.c.l.b16 %v321
    %v407 = vunpack.c.h.b16 %v321
    %v408 = vunpack.c.l.b16 %v322
    %v409 = vunpack.c.h.b16 %v322
    %v410 = vunpack.c.l.b16 %v323
    %v411 = vunpack.c.h.b16 %v323
    %v412 = vunpack.c.l.b16 %v324
    %v413 = vunpack.c.h.b16 %v324
    %v414 = vunpack.c.l.b16 %v325
    %v415 = vunpack.c.h.b16 %v325
    %v416 = vunpack.c.l.b16 %v326
    %v417 = vunpack.c.h.b16 %v326
    %v418 = vunpack.c.l.b16 %v327
    %v419 = vunpack.c.h.b16 %v327
    %v420 = vunpack.c.l.b16 %v328
    %v421 = vunpack.c.h.b16 %v328
    %v422 = vunpack.c.l.b16 %v329
    %v423 = vunpack.c.h.b16 %v329
    %v424 = vunpack.c.l.b16 %v330
    %v425 = vunpack.c.h.b16 %v330
    %v426 = vunpack.c.l.b16 %v331
    %v427 = vunpack.c.h.b16 %v331
    %v428 = vpack.c.b16 %v368, %v364
    %v429 = vpack.c.b16 %v369, %v365
    %v430 = vpack.c.b16 %v370, %v366
    %v431 = vpack.c.b16 %v371, %v367
    %v432 = vpack.c.b16 %v376, %v372
    %v433 = vpack.c.b16 %v377, %v373
    %v434 = vpack.c.b16 %v378, %v374
    %v435 = vpack.c.b16 %v379, %v375
    %v436 = vpack.c.b16 %v384, %v380
    %v437 = vpack.c.b16 %v385, %v381
    %v438 = vpack.c.b16 %v386, %v382
    %v439 = vpack.c.b16 %v387, %v383
    %v440 = vpack.c.b16 %v392, %v388
    %v441 = vpack.c.b16 %v393, %v389
    %v442 = vpack.c.b16 %v394, %v390
    %v443 = vpack.c.b16 %v395, %v391
    %v444 = vpack.c.b16 %v400, %v396
    %v445 = vpack.c.b16 %v401, %v397
    %v446 = vpack.c.b16 %v402, %v398
    %v447 = vpack.c.b16 %v403, %v399
    %v448 = vpack.c.b16 %v408, %v404
    %v449 = vpack.c.b16 %v409, %v405
    %v450 = vpack.c.b16 %v410, %v406
    %v451 = vpack.c.b16 %v411, %v407
    %v452 = vpack.c.b16 %v416, %v412
    %v453 = vpack.c.b16 %v417, %v413
    %v454 = vpack.c.b16 %v418, %v414
    %v455 = vpack.c.b16 %v419, %v415
    %v456 = vpack.c.b16 %v424, %v420
    %v457 = vpack.c.b16 %v425, %v421
    %v458 = vpack.c.b16 %v426, %v422
    %v459 = vpack.c.b16 %v427, %v423
    %492 = vmatprep.subr.bf16.mxu0 %v429
    %493 = vmatpush1.bf16.msra.mxu0 %v428
    %494 = vmatprep.subr.bf16.mxu0 %v433
    %495 = vmatpush1.bf16.msra.mxu0 %v432
    %496 = vmatprep.subr.bf16.mxu0 %v437
    %497 = vmatpush1.bf16.msra.mxu0 %v436
    %498 = vmatprep.subr.bf16.mxu0 %v441
    %499 = vmatpush1.bf16.msra.mxu0 %v440
    %500 = vmatprep.subr.bf16.mxu0 %v445
    %501 = vmatpush1.bf16.msra.mxu0 %v444
    %502 = vmatprep.subr.bf16.mxu0 %v449
    %503 = vmatpush1.bf16.msra.mxu0 %v448
    %504 = vmatprep.subr.bf16.mxu0 %v453
    %505 = vmatpush1.bf16.msra.mxu0 %v452
    %506 = vmatprep.subr.bf16.mxu0 %v457
    %507 = vmatpush1.bf16.msra.mxu0 %v456
    %508 = vmatprep.subr.bf16.mxu0 0
    %509 = vmatpush1.bf16.msra.mxu0 0
    %510 = vmatprep.subr.bf16.mxu0 0
    %511 = vmatpush1.bf16.msra.mxu0 0
    %512 = vmatprep.subr.bf16.mxu0 0
    %513 = vmatpush1.bf16.msra.mxu0 0
    %514 = vmatprep.subr.bf16.mxu0 0
    %515 = vmatpush1.bf16.msra.mxu0 0
    %516 = vmatprep.subr.bf16.mxu0 0
    %517 = vmatpush1.bf16.msra.mxu0 0
    %518 = vmatprep.subr.bf16.mxu0 0
    %519 = vmatpush1.bf16.msra.mxu0 0
    %520 = vmatprep.subr.bf16.mxu0 0
    %521 = vmatpush1.bf16.msra.mxu0 0
    %522 = vmatprep.subr.bf16.mxu0 0
    %523 = vmatpush1.bf16.msra.mxu0 0
    %524 = vmatprep.mubr.bf16.mxu0 0
    %525 = vmatmul.mubr.bf16.gmra.mrb[0].mxu0 0
    %v526 = vpop.f32.mrb[0].mxu0
    %v527 = vadd.f32 0.0, %v526
    %v528 = vpop.f32.mrb[0].mxu0
    %v529 = vadd.f32 0.0, %v528
    %v530 = vpop.f32.mrb[0].mxu0
    %v531 = vpop.f32.mrb[0].mxu0
    %532 = vdwg.mxu0
    %533 = vmatprep.subr.bf16.mxu0 %v431
    %534 = vmatpush1.bf16.msra.mxu0 %v430
    %535 = vmatprep.subr.bf16.mxu0 %v435
    %536 = vmatpush1.bf16.msra.mxu0 %v434
    %537 = vmatprep.subr.bf16.mxu0 %v439
    %538 = vmatpush1.bf16.msra.mxu0 %v438
    %539 = vmatprep.subr.bf16.mxu0 %v443
    %540 = vmatpush1.bf16.msra.mxu0 %v442
    %541 = vmatprep.subr.bf16.mxu0 %v447
    %542 = vmatpush1.bf16.msra.mxu0 %v446
    %543 = vmatprep.subr.bf16.mxu0 %v451
    %544 = vmatpush1.bf16.msra.mxu0 %v450
    %545 = vmatprep.subr.bf16.mxu0 %v455
    %546 = vmatpush1.bf16.msra.mxu0 %v454
    %547 = vmatprep.subr.bf16.mxu0 %v459
    %548 = vmatpush1.bf16.msra.mxu0 %v458
    %549 = vmatprep.subr.bf16.mxu0 0
    %550 = vmatpush1.bf16.msra.mxu0 0
    %551 = vmatprep.subr.bf16.mxu0 0
    %552 = vmatpush1.bf16.msra.mxu0 0
    %553 = vmatprep.subr.bf16.mxu0 0
    %554 = vmatpush1.bf16.msra.mxu0 0
    %555 = vmatprep.subr.bf16.mxu0 0
    %556 = vmatpush1.bf16.msra.mxu0 0
    %557 = vmatprep.subr.bf16.mxu0 0
    %558 = vmatpush1.bf16.msra.mxu0 0
    %559 = vmatprep.subr.bf16.mxu0 0
    %560 = vmatpush1.bf16.msra.mxu0 0
    %561 = vmatprep.subr.bf16.mxu0 0
    %562 = vmatpush1.bf16.msra.mxu0 0
    %563 = vmatprep.subr.bf16.mxu0 0
    %564 = vmatpush1.bf16.msra.mxu0 0
    %565 = vmatprep.mubr.bf16.mxu0 0
    %566 = vmatmul.mubr.bf16.gmra.mrb[0].mxu0 0
    %v567 = vpop.f32.mrb[0].mxu0
    %v568 = vadd.f32 0.0, %v567
    %v569 = vpop.f32.mrb[0].mxu0
    %v570 = vadd.f32 0.0, %v569
    %v571 = vpop.f32.mrb[0].mxu0
    %v572 = vpop.f32.mrb[0].mxu0
    %573 = vdwg.mxu0
    %v574 = vadd.f32 %v296, %v527
    %v575 = vadd.f32 %v297, %v529
    %v576 = vadd.f32 %v298, %v568
    %v577 = vadd.f32 %v299, %v570
    %v578 = vxor.u32 %v574, 2147483648
    %v579 = vxor.u32 %v575, 2147483648
    %v580 = vxor.u32 %v576, 2147483648
    %v581 = vmul.f32 %v578, 1.442695
    %v582 = vpow.pop %v581
    %v583 = vmul.f32 %v579, 1.442695
    %v584 = vpow.pop %v583
    %v585 = vmul.f32 %v580, 1.442695
    %v586 = vpow.pop %v585
    %v587 = vadd.f32 %v582, 1.0
    %v588 = vadd.f32 %v584, 1.0
    %v589 = vadd.f32 %v586, 1.0
    %v590 = vrcp.pop %v587
    %v591 = vmul.f32 1.0, %v590
    %v592 = vrcp.pop %v588
    %v593 = vmul.f32 1.0, %v592
    %v594 = vrcp.pop %v589
    %v595 = vmul.f32 1.0, %v594
    %v596 = vtanh.pop %v577
    %v597 = vmul.f32 %v593, 0.0
    %v598 = vmul.f32 %v591, %v596
    %v599 = vadd.f32 %v597, %v598
    %v600 = vtanh.pop %v599
    %v601 = vmul.f32 %v595, %v600
    %v602 = vld [vmem:[#allocation2 + $0x20] sm:$0xff]
    %v603 = vld [vmem:[#allocation2 + $0x28] sm:$0xff]
    %v604 = vld [vmem:[#allocation2 + $0x30] sm:$0xff]
    %v605 = vld [vmem:[#allocation2 + $0x38] sm:$0xff]
    %v606 = vpack.c.bf16 %v601, %v601
    %607 = vmatprep.subr.bf16.mxu0 %v429
    %608 = vmatpush1.bf16.msra.mxu0 %v428
    %609 = vmatprep.subr.bf16.mxu0 %v433
    %610 = vmatpush1.bf16.msra.mxu0 %v432
    %611 = vmatprep.subr.bf16.mxu0 %v437
    %612 = vmatpush1.bf16.msra.mxu0 %v436
    %613 = vmatprep.subr.bf16.mxu0 %v441
    %614 = vmatpush1.bf16.msra.mxu0 %v440
    %615 = vmatprep.subr.bf16.mxu0 %v445
    %616 = vmatpush1.bf16.msra.mxu0 %v444
    %617 = vmatprep.subr.bf16.mxu0 %v449
    %618 = vmatpush1.bf16.msra.mxu0 %v448
    %619 = vmatprep.subr.bf16.mxu0 %v453
    %620 = vmatpush1.bf16.msra.mxu0 %v452
    %621 = vmatprep.subr.bf16.mxu0 %v457
    %622 = vmatpush1.bf16.msra.mxu0 %v456
    %623 = vmatprep.subr.bf16.mxu0 0
    %624 = vmatpush1.bf16.msra.mxu0 0
    %625 = vmatprep.subr.bf16.mxu0 0
    %626 = vmatpush1.bf16.msra.mxu0 0
    %627 = vmatprep.subr.bf16.mxu0 0
    %628 = vmatpush1.bf16.msra.mxu0 0
    %629 = vmatprep.subr.bf16.mxu0 0
    %630 = vmatpush1.bf16.msra.mxu0 0
    %631 = vmatprep.subr.bf16.mxu0 0
    %632 = vmatpush1.bf16.msra.mxu0 0
    %633 = vmatprep.subr.bf16.mxu0 0
    %634 = vmatpush1.bf16.msra.mxu0 0
    %635 = vmatprep.subr.bf16.mxu0 0
    %636 = vmatpush1.bf16.msra.mxu0 0
    %637 = vmatprep.subr.bf16.mxu0 0
    %638 = vmatpush1.bf16.msra.mxu0 0
    %639 = vmatprep.mubr.bf16.mxu0 0
    %640 = vmatmul.mubr.bf16.gmra.mrb[0].mxu0 %v606
    %v641 = vpop.f32.mrb[0].mxu0
    %v642 = vadd.f32 0.0, %v641
    %v643 = vpop.f32.mrb[0].mxu0
    %v644 = vadd.f32 0.0, %v643
    %v645 = vpop.f32.mrb[0].mxu0
    %v646 = vpop.f32.mrb[0].mxu0
    %647 = vdwg.mxu0
    %648 = vmatprep.subr.bf16.mxu0 %v431
    %649 = vmatpush1.bf16.msra.mxu0 %v430
    %650 = vmatprep.subr.bf16.mxu0 %v435
    %651 = vmatpush1.bf16.msra.mxu0 %v434
    %652 = vmatprep.subr.bf16.mxu0 %v439
    %653 = vmatpush1.bf16.msra.mxu0 %v438
    %654 = vmatprep.subr.bf16.mxu0 %v443
    %655 = vmatpush1.bf16.msra.mxu0 %v442
    %656 = vmatprep.subr.bf16.mxu0 %v447
    %657 = vmatpush1.bf16.msra.mxu0 %v446
    %658 = vmatprep.subr.bf16.mxu0 %v451
    %659 = vmatpush1.bf16.msra.mxu0 %v450
    %660 = vmatprep.subr.bf16.mxu0 %v455
    %661 = vmatpush1.bf16.msra.mxu0 %v454
    %662 = vmatprep.subr.bf16.mxu0 %v459
    %663 = vmatpush1.bf16.msra.mxu0 %v458
    %664 = vmatprep.subr.bf16.mxu0 0
    %665 = vmatpush1.bf16.msra.mxu0 0
    %666 = vmatprep.subr.bf16.mxu0 0
    %667 = vmatpush1.bf16.msra.mxu0 0
    %668 = vmatprep.subr.bf16.mxu0 0
    %669 = vmatpush1.bf16.msra.mxu0 0
    %670 = vmatprep.subr.bf16.mxu0 0
    %671 = vmatpush1.bf16.msra.mxu0 0
    %672 = vmatprep.subr.bf16.mxu0 0
    %673 = vmatpush1.bf16.msra.mxu0 0
    %674 = vmatprep.subr.bf16.mxu0 0
    %675 = vmatpush1.bf16.msra.mxu0 0
    %676 = vmatprep.subr.bf16.mxu0 0
    %677 = vmatpush1.bf16.msra.mxu0 0
    %678 = vmatprep.subr.bf16.mxu0 0
    %679 = vmatpush1.bf16.msra.mxu0 0
    %680 = vmatprep.mubr.bf16.mxu0 0
    %681 = vmatmul.mubr.bf16.gmra.mrb[0].mxu0 %v606
    %v682 = vpop.f32.mrb[0].mxu0
    %v683 = vadd.f32 0.0, %v682
    %v684 = vpop.f32.mrb[0].mxu0
    %v685 = vadd.f32 0.0, %v684
    %v686 = vpop.f32.mrb[0].mxu0
    %v687 = vpop.f32.mrb[0].mxu0
    %688 = vdwg.mxu0
    %v689 = vadd.f32 %v602, %v642
    %v690 = vadd.f32 %v603, %v644
    %v691 = vadd.f32 %v604, %v683
    %v692 = vadd.f32 %v605, %v685
    %v693 = vxor.u32 %v689, 2147483648
    %v694 = vxor.u32 %v690, 2147483648
    %v695 = vxor.u32 %v691, 2147483648
    %v696 = vmul.f32 %v693, 1.442695
    %v697 = vpow.pop %v696
    %v698 = vmul.f32 %v694, 1.442695
    %v699 = vpow.pop %v698
    %v700 = vmul.f32 %v695, 1.442695
    %v701 = vpow.pop %v700
    %v702 = vadd.f32 %v697, 1.0
    %v703 = vadd.f32 %v699, 1.0
    %v704 = vadd.f32 %v701, 1.0
    %v705 = vrcp.pop %v702
    %v706 = vmul.f32 1.0, %v705
    %v707 = vrcp.pop %v703
    %v708 = vmul.f32 1.0, %v707
    %v709 = vrcp.pop %v704
    %v710 = vmul.f32 1.0, %v709
    %v711 = vtanh.pop %v692
    %v712 = vmul.f32 %v708, %v599
    %v713 = vmul.f32 %v706, %v711
    %v714 = vadd.f32 %v712, %v713
    %v715 = vtanh.pop %v714
    %v716 = vmul.f32 %v710, %v715
    %v717 = vld [vmem:[#allocation2 + $0x40] sm:$0xff]
    %v718 = vld [vmem:[#allocation2 + $0x48] sm:$0xff]
    %v719 = vld [vmem:[#allocation2 + $0x50] sm:$0xff]
    %v720 = vld [vmem:[#allocation2 + $0x58] sm:$0xff]
    %v721 = vpack.c.bf16 %v716, %v716
    %722 = vmatprep.subr.bf16.mxu0 %v429
    %723 = vmatpush1.bf16.msra.mxu0 %v428
    %724 = vmatprep.subr.bf16.mxu0 %v433
    %725 = vmatpush1.bf16.msra.mxu0 %v432
    %726 = vmatprep.subr.bf16.mxu0 %v437
    %727 = vmatpush1.bf16.msra.mxu0 %v436
    %728 = vmatprep.subr.bf16.mxu0 %v441
    %729 = vmatpush1.bf16.msra.mxu0 %v440
    %730 = vmatprep.subr.bf16.mxu0 %v445
    %731 = vmatpush1.bf16.msra.mxu0 %v444
    %732 = vmatprep.subr.bf16.mxu0 %v449
    %733 = vmatpush1.bf16.msra.mxu0 %v448
    %734 = vmatprep.subr.bf16.mxu0 %v453
    %735 = vmatpush1.bf16.msra.mxu0 %v452
    %736 = vmatprep.subr.bf16.mxu0 %v457
    %737 = vmatpush1.bf16.msra.mxu0 %v456
    %738 = vmatprep.subr.bf16.mxu0 0
    %739 = vmatpush1.bf16.msra.mxu0 0
    %740 = vmatprep.subr.bf16.mxu0 0
    %741 = vmatpush1.bf16.msra.mxu0 0
    %742 = vmatprep.subr.bf16.mxu0 0
    %743 = vmatpush1.bf16.msra.mxu0 0
    %744 = vmatprep.subr.bf16.mxu0 0
    %745 = vmatpush1.bf16.msra.mxu0 0
    %746 = vmatprep.subr.bf16.mxu0 0
    %747 = vmatpush1.bf16.msra.mxu0 0
    %748 = vmatprep.subr.bf16.mxu0 0
    %749 = vmatpush1.bf16.msra.mxu0 0
    %750 = vmatprep.subr.bf16.mxu0 0
    %751 = vmatpush1.bf16.msra.mxu0 0
    %752 = vmatprep.subr.bf16.mxu0 0
    %753 = vmatpush1.bf16.msra.mxu0 0
    %754 = vmatprep.mubr.bf16.mxu0 0
    %755 = vmatmul.mubr.bf16.gmra.mrb[0].mxu0 %v721
    %v756 = vpop.f32.mrb[0].mxu0
    %v757 = vadd.f32 0.0, %v756
    %v758 = vpop.f32.mrb[0].mxu0
    %v759 = vadd.f32 0.0, %v758
    %v760 = vpop.f32.mrb[0].mxu0
    %v761 = vpop.f32.mrb[0].mxu0
    %762 = vdwg.mxu0
    %763 = vmatprep.subr.bf16.mxu0 %v431
    %764 = vmatpush1.bf16.msra.mxu0 %v430
    %765 = vmatprep.subr.bf16.mxu0 %v435
    %766 = vmatpush1.bf16.msra.mxu0 %v434
    %767 = vmatprep.subr.bf16.mxu0 %v439
    %768 = vmatpush1.bf16.msra.mxu0 %v438
    %769 = vmatprep.subr.bf16.mxu0 %v443
    %770 = vmatpush1.bf16.msra.mxu0 %v442
    %771 = vmatprep.subr.bf16.mxu0 %v447
    %772 = vmatpush1.bf16.msra.mxu0 %v446
    %773 = vmatprep.subr.bf16.mxu0 %v451
    %774 = vmatpush1.bf16.msra.mxu0 %v450
    %775 = vmatprep.subr.bf16.mxu0 %v455
    %776 = vmatpush1.bf16.msra.mxu0 %v454
    %777 = vmatprep.subr.bf16.mxu0 %v459
    %778 = vmatpush1.bf16.msra.mxu0 %v458
    %779 = vmatprep.subr.bf16.mxu0 0
    %780 = vmatpush1.bf16.msra.mxu0 0
    %781 = vmatprep.subr.bf16.mxu0 0
    %782 = vmatpush1.bf16.msra.mxu0 0
    %783 = vmatprep.subr.bf16.mxu0 0
    %784 = vmatpush1.bf16.msra.mxu0 0
    %785 = vmatprep.subr.bf16.mxu0 0
    %786 = vmatpush1.bf16.msra.mxu0 0
    %787 = vmatprep.subr.bf16.mxu0 0
    %788 = vmatpush1.bf16.msra.mxu0 0
    %789 = vmatprep.subr.bf16.mxu0 0
    %790 = vmatpush1.bf16.msra.mxu0 0
    %791 = vmatprep.subr.bf16.mxu0 0
    %792 = vmatpush1.bf16.msra.mxu0 0
    %793 = vmatprep.subr.bf16.mxu0 0
    %794 = vmatpush1.bf16.msra.mxu0 0
    %795 = vmatprep.mubr.bf16.mxu0 0
    %796 = vmatmul.mubr.bf16.gmra.mrb[0].mxu0 %v721
    %v797 = vpop.f32.mrb[0].mxu0
    %v798 = vadd.f32 0.0, %v797
    %v799 = vpop.f32.mrb[0].mxu0
    %v800 = vadd.f32 0.0, %v799
    %v801 = vpop.f32.mrb[0].mxu0
    %v802 = vpop.f32.mrb[0].mxu0
    %803 = vdwg.mxu0
    %v804 = vadd.f32 %v717, %v757
    %v805 = vadd.f32 %v718, %v759
    %v806 = vadd.f32 %v719, %v798
    %v807 = vadd.f32 %v720, %v800
    %v808 = vxor.u32 %v804, 2147483648
    %v809 = vxor.u32 %v805, 2147483648
    %v810 = vxor.u32 %v806, 2147483648
    %v811 = vmul.f32 %v808, 1.442695
    %v812 = vpow.pop %v811
    %v813 = vmul.f32 %v809, 1.442695
    %v814 = vpow.pop %v813
    %v815 = vmul.f32 %v810, 1.442695
    %v816 = vpow.pop %v815
    %v817 = vadd.f32 %v812, 1.0
    %v818 = vadd.f32 %v814, 1.0
    %v819 = vadd.f32 %v816, 1.0
    %v820 = vrcp.pop %v817
    %v821 = vmul.f32 1.0, %v820
    %v822 = vrcp.pop %v818
    %v823 = vmul.f32 1.0, %v822
    %v824 = vrcp.pop %v819
    %v825 = vmul.f32 1.0, %v824
    %v826 = vtanh.pop %v807
    %v827 = vmul.f32 %v823, %v714
    %v828 = vmul.f32 %v821, %v826
    %v829 = vadd.f32 %v827, %v828
    %v830 = vtanh.pop %v829
    %v831 = vmul.f32 %v825, %v830
    %v832 = vld [vmem:[#allocation2 + $0x60] sm:$0xff]
    %v833 = vld [vmem:[#allocation2 + $0x68] sm:$0xff]
    %v834 = vld [vmem:[#allocation2 + $0x70] sm:$0xff]
    %v835 = vld [vmem:[#allocation2 + $0x78] sm:$0xff]
    %v836 = vpack.c.bf16 %v831, %v831
    %837 = vmatprep.subr.bf16.mxu0 %v429
    %838 = vmatpush1.bf16.msra.mxu0 %v428
    %839 = vmatprep.subr.bf16.mxu0 %v433
    %840 = vmatpush1.bf16.msra.mxu0 %v432
    %841 = vmatprep.subr.bf16.mxu0 %v437
    %842 = vmatpush1.bf16.msra.mxu0 %v436
    %843 = vmatprep.subr.bf16.mxu0 %v441
    %844 = vmatpush1.bf16.msra.mxu0 %v440
    %845 = vmatprep.subr.bf16.mxu0 %v445
    %846 = vmatpush1.bf16.msra.mxu0 %v444
    %847 = vmatprep.subr.bf16.mxu0 %v449
    %848 = vmatpush1.bf16.msra.mxu0 %v448
    %849 = vmatprep.subr.bf16.mxu0 %v453
    %850 = vmatpush1.bf16.msra.mxu0 %v452
    %851 = vmatprep.subr.bf16.mxu0 %v457
    %852 = vmatpush1.bf16.msra.mxu0 %v456
    %853 = vmatprep.subr.bf16.mxu0 0
    %854 = vmatpush1.bf16.msra.mxu0 0
    %855 = vmatprep.subr.bf16.mxu0 0
    %856 = vmatpush1.bf16.msra.mxu0 0
    %857 = vmatprep.subr.bf16.mxu0 0
    %858 = vmatpush1.bf16.msra.mxu0 0
    %859 = vmatprep.subr.bf16.mxu0 0
    %860 = vmatpush1.bf16.msra.mxu0 0
    %861 = vmatprep.subr.bf16.mxu0 0
    %862 = vmatpush1.bf16.msra.mxu0 0
    %863 = vmatprep.subr.bf16.mxu0 0
    %864 = vmatpush1.bf16.msra.mxu0 0
    %865 = vmatprep.subr.bf16.mxu0 0
    %866 = vmatpush1.bf16.msra.mxu0 0
    %867 = vmatprep.subr.bf16.mxu0 0
    %868 = vmatpush1.bf16.msra.mxu0 0
    %869 = vmatprep.mubr.bf16.mxu0 0
    %870 = vmatmul.mubr.bf16.gmra.mrb[0].mxu0 %v836
    %v871 = vpop.f32.mrb[0].mxu0
    %v872 = vadd.f32 0.0, %v871
    %v873 = vpop.f32.mrb[0].mxu0
    %v874 = vadd.f32 0.0, %v873
    %v875 = vpop.f32.mrb[0].mxu0
    %v876 = vpop.f32.mrb[0].mxu0
    %877 = vdwg.mxu0
    %878 = vmatprep.subr.bf16.mxu0 %v431
    %879 = vmatpush1.bf16.msra.mxu0 %v430
    %880 = vmatprep.subr.bf16.mxu0 %v435
    %881 = vmatpush1.bf16.msra.mxu0 %v434
    %882 = vmatprep.subr.bf16.mxu0 %v439
    %883 = vmatpush1.bf16.msra.mxu0 %v438
    %884 = vmatprep.subr.bf16.mxu0 %v443
    %885 = vmatpush1.bf16.msra.mxu0 %v442
    %886 = vmatprep.subr.bf16.mxu0 %v447
    %887 = vmatpush1.bf16.msra.mxu0 %v446
    %888 = vmatprep.subr.bf16.mxu0 %v451
    %889 = vmatpush1.bf16.msra.mxu0 %v450
    %890 = vmatprep.subr.bf16.mxu0 %v455
    %891 = vmatpush1.bf16.msra.mxu0 %v454
    %892 = vmatprep.subr.bf16.mxu0 %v459
    %893 = vmatpush1.bf16.msra.mxu0 %v458
    %894 = vmatprep.subr.bf16.mxu0 0
    %895 = vmatpush1.bf16.msra.mxu0 0
    %896 = vmatprep.subr.bf16.mxu0 0
    %897 = vmatpush1.bf16.msra.mxu0 0
    %898 = vmatprep.subr.bf16.mxu0 0
    %899 = vmatpush1.bf16.msra.mxu0 0
    %900 = vmatprep.subr.bf16.mxu0 0
    %901 = vmatpush1.bf16.msra.mxu0 0
    %902 = vmatprep.subr.bf16.mxu0 0
    %903 = vmatpush1.bf16.msra.mxu0 0
    %904 = vmatprep.subr.bf16.mxu0 0
    %905 = vmatpush1.bf16.msra.mxu0 0
    %906 = vmatprep.subr.bf16.mxu0 0
    %907 = vmatpush1.bf16.msra.mxu0 0
    %908 = vmatprep.subr.bf16.mxu0 0
    %909 = vmatpush1.bf16.msra.mxu0 0
    %910 = vmatprep.mubr.bf16.mxu0 0
    %911 = vmatmul.mubr.bf16.gmra.mrb[0].mxu0 %v836
    %v912 = vpop.f32.mrb[0].mxu0
    %v913 = vadd.f32 0.0, %v912
    %v914 = vpop.f32.mrb[0].mxu0
    %v915 = vadd.f32 0.0, %v914
    %v916 = vpop.f32.mrb[0].mxu0
    %v917 = vpop.f32.mrb[0].mxu0
    %918 = vdwg.mxu0
    %v919 = vadd.f32 %v832, %v872
    %v920 = vadd.f32 %v833, %v874
    %v921 = vadd.f32 %v834, %v913
    %v922 = vadd.f32 %v835, %v915
    %v923 = vxor.u32 %v919, 2147483648
    %v924 = vxor.u32 %v920, 2147483648
    %v925 = vxor.u32 %v921, 2147483648
    %v926 = vmul.f32 %v923, 1.442695
    %v927 = vpow.pop %v926
    %v928 = vmul.f32 %v924, 1.442695
    %v929 = vpow.pop %v928
    %v930 = vmul.f32 %v925, 1.442695
    %v931 = vpow.pop %v930
    %v932 = vadd.f32 %v927, 1.0
    %v933 = vadd.f32 %v929, 1.0
    %v934 = vadd.f32 %v931, 1.0
    %v935 = vrcp.pop %v932
    %v936 = vmul.f32 1.0, %v935
    %v937 = vrcp.pop %v933
    %v938 = vmul.f32 1.0, %v937
    %v939 = vrcp.pop %v934
    %v940 = vmul.f32 1.0, %v939
    %v941 = vtanh.pop %v922
    %v942 = vmul.f32 %v938, %v829
    %v943 = vmul.f32 %v936, %v941
    %v944 = vadd.f32 %v942, %v943
    %v945 = vtanh.pop %v944
    %v946 = vmul.f32 %v940, %v945
    %v947 = vld [vmem:[#allocation2 + $0x80] sm:$0xff]
    %v948 = vld [vmem:[#allocation2 + $0x88] sm:$0xff]
    %v949 = vld [vmem:[#allocation2 + $0x90] sm:$0xff]
    %v950 = vld [vmem:[#allocation2 + $0x98] sm:$0xff]
    %v951 = vpack.c.bf16 %v946, %v946
    %952 = vmatprep.subr.bf16.mxu0 %v429
    %953 = vmatpush1.bf16.msra.mxu0 %v428
    %954 = vmatprep.subr.bf16.mxu0 %v433
    %955 = vmatpush1.bf16.msra.mxu0 %v432
    %956 = vmatprep.subr.bf16.mxu0 %v437
    %957 = vmatpush1.bf16.msra.mxu0 %v436
    %958 = vmatprep.subr.bf16.mxu0 %v441
    %959 = vmatpush1.bf16.msra.mxu0 %v440
    %960 = vmatprep.subr.bf16.mxu0 %v445
    %961 = vmatpush1.bf16.msra.mxu0 %v444
    %962 = vmatprep.subr.bf16.mxu0 %v449
    %963 = vmatpush1.bf16.msra.mxu0 %v448
    %964 = vmatprep.subr.bf16.mxu0 %v453
    %965 = vmatpush1.bf16.msra.mxu0 %v452
    %966 = vmatprep.subr.bf16.mxu0 %v457
    %967 = vmatpush1.bf16.msra.mxu0 %v456
    %968 = vmatprep.subr.bf16.mxu0 0
    %969 = vmatpush1.bf16.msra.mxu0 0
    %970 = vmatprep.subr.bf16.mxu0 0
    %971 = vmatpush1.bf16.msra.mxu0 0
    %972 = vmatprep.subr.bf16.mxu0 0
    %973 = vmatpush1.bf16.msra.mxu0 0
    %974 = vmatprep.subr.bf16.mxu0 0
    %975 = vmatpush1.bf16.msra.mxu0 0
    %976 = vmatprep.subr.bf16.mxu0 0
    %977 = vmatpush1.bf16.msra.mxu0 0
    %978 = vmatprep.subr.bf16.mxu0 0
    %979 = vmatpush1.bf16.msra.mxu0 0
    %980 = vmatprep.subr.bf16.mxu0 0
    %981 = vmatpush1.bf16.msra.mxu0 0
    %982 = vmatprep.subr.bf16.mxu0 0
    %983 = vmatpush1.bf16.msra.mxu0 0
    %984 = vmatprep.mubr.bf16.mxu0 0
    %985 = vmatmul.mubr.bf16.gmra.mrb[0].mxu0 %v951
    %v986 = vpop.f32.mrb[0].mxu0
    %v987 = vadd.f32 0.0, %v986
    %v988 = vpop.f32.mrb[0].mxu0
    %v989 = vadd.f32 0.0, %v988
    %v990 = vpop.f32.mrb[0].mxu0
    %v991 = vpop.f32.mrb[0].mxu0
    %992 = vdwg.mxu0
    %993 = vmatprep.subr.bf16.mxu0 %v431
    %994 = vmatpush1.bf16.msra.mxu0 %v430
    %995 = vmatprep.subr.bf16.mxu0 %v435
    %996 = vmatpush1.bf16.msra.mxu0 %v434
    %997 = vmatprep.subr.bf16.mxu0 %v439
    %998 = vmatpush1.bf16.msra.mxu0 %v438
    %999 = vmatprep.subr.bf16.mxu0 %v443
    %1000 = vmatpush1.bf16.msra.mxu0 %v442
    %1001 = vmatprep.subr.bf16.mxu0 %v447
    %1002 = vmatpush1.bf16.msra.mxu0 %v446
    %1003 = vmatprep.subr.bf16.mxu0 %v451
    %1004 = vmatpush1.bf16.msra.mxu0 %v450
    %1005 = vmatprep.subr.bf16.mxu0 %v455
    %1006 = vmatpush1.bf16.msra.mxu0 %v454
    %1007 = vmatprep.subr.bf16.mxu0 %v459
    %1008 = vmatpush1.bf16.msra.mxu0 %v458
    %1009 = vmatprep.subr.bf16.mxu0 0
    %1010 = vmatpush1.bf16.msra.mxu0 0
    %1011 = vmatprep.subr.bf16.mxu0 0
    %1012 = vmatpush1.bf16.msra.mxu0 0
    %1013 = vmatprep.subr.bf16.mxu0 0
    %1014 = vmatpush1.bf16.msra.mxu0 0
    %1015 = vmatprep.subr.bf16.mxu0 0
    %1016 = vmatpush1.bf16.msra.mxu0 0
    %1017 = vmatprep.subr.bf16.mxu0 0
    %1018 = vmatpush1.bf16.msra.mxu0 0
    %1019 = vmatprep.subr.bf16.mxu0 0
    %1020 = vmatpush1.bf16.msra.mxu0 0
    %1021 = vmatprep.subr.bf16.mxu0 0
    %1022 = vmatpush1.bf16.msra.mxu0 0
    %1023 = vmatprep.subr.bf16.mxu0 0
    %1024 = vmatpush1.bf16.msra.mxu0 0
    %1025 = vmatprep.mubr.bf16.mxu0 0
    %1026 = vmatmul.mubr.bf16.gmra.mrb[0].mxu0 %v951
    %v1027 = vpop.f32.mrb[0].mxu0
    %v1028 = vadd.f32 0.0, %v1027
    %v1029 = vpop.f32.mrb[0].mxu0
    %v1030 = vadd.f32 0.0, %v1029
    %v1031 = vpop.f32.mrb[0].mxu0
    %v1032 = vpop.f32.mrb[0].mxu0
    %1033 = vdwg.mxu0
    %v1034 = vadd.f32 %v947, %v987
    %v1035 = vadd.f32 %v948, %v989
    %v1036 = vadd.f32 %v949, %v1028
    %v1037 = vadd.f32 %v950, %v1030
    %v1038 = vxor.u32 %v1034, 2147483648
    %v1039 = vxor.u32 %v1035, 2147483648
    %v1040 = vxor.u32 %v1036, 2147483648
    %v1041 = vmul.f32 %v1038, 1.442695
    %v1042 = vpow.pop %v1041
    %v1043 = vmul.f32 %v1039, 1.442695
    %v1044 = vpow.pop %v1043
    %v1045 = vmul.f32 %v1040, 1.442695
    %v1046 = vpow.pop %v1045
    %v1047 = vadd.f32 %v1042, 1.0
    %v1048 = vadd.f32 %v1044, 1.0
    %v1049 = vadd.f32 %v1046, 1.0
    %v1050 = vrcp.pop %v1047
    %v1051 = vmul.f32 1.0, %v1050
    %v1052 = vrcp.pop %v1048
    %v1053 = vmul.f32 1.0, %v1052
    %v1054 = vrcp.pop %v1049
    %v1055 = vmul.f32 1.0, %v1054
    %v1056 = vtanh.pop %v1037
    %v1057 = vmul.f32 %v1053, %v944
    %v1058 = vmul.f32 %v1051, %v1056
    %v1059 = vadd.f32 %v1057, %v1058
    %v1060 = vtanh.pop %v1059
    %v1061 = vmul.f32 %v1055, %v1060
    %v1062 = vld [vmem:[#allocation2 + $0xa0] sm:$0xff]
    %v1063 = vld [vmem:[#allocation2 + $0xa8] sm:$0xff]
    %v1064 = vld [vmem:[#allocation2 + $0xb0] sm:$0xff]
    %v1065 = vld [vmem:[#allocation2 + $0xb8] sm:$0xff]
    %v1066 = vpack.c.bf16 %v1061, %v1061
    %1067 = vmatprep.subr.bf16.mxu0 %v429
    %1068 = vmatpush1.bf16.msra.mxu0 %v428
    %1069 = vmatprep.subr.bf16.mxu0 %v433
    %1070 = vmatpush1.bf16.msra.mxu0 %v432
    %1071 = vmatprep.subr.bf16.mxu0 %v437
    %1072 = vmatpush1.bf16.msra.mxu0 %v436
    %1073 = vmatprep.subr.bf16.mxu0 %v441
    %1074 = vmatpush1.bf16.msra.mxu0 %v440
    %1075 = vmatprep.subr.bf16.mxu0 %v445
    %1076 = vmatpush1.bf16.msra.mxu0 %v444
    %1077 = vmatprep.subr.bf16.mxu0 %v449
    %1078 = vmatpush1.bf16.msra.mxu0 %v448
    %1079 = vmatprep.subr.bf16.mxu0 %v453
    %1080 = vmatpush1.bf16.msra.mxu0 %v452
    %1081 = vmatprep.subr.bf16.mxu0 %v457
    %1082 = vmatpush1.bf16.msra.mxu0 %v456
    %1083 = vmatprep.subr.bf16.mxu0 0
    %1084 = vmatpush1.bf16.msra.mxu0 0
    %1085 = vmatprep.subr.bf16.mxu0 0
    %1086 = vmatpush1.bf16.msra.mxu0 0
    %1087 = vmatprep.subr.bf16.mxu0 0
    %1088 = vmatpush1.bf16.msra.mxu0 0
    %1089 = vmatprep.subr.bf16.mxu0 0
    %1090 = vmatpush1.bf16.msra.mxu0 0
    %1091 = vmatprep.subr.bf16.mxu0 0
    %1092 = vmatpush1.bf16.msra.mxu0 0
    %1093 = vmatprep.subr.bf16.mxu0 0
    %1094 = vmatpush1.bf16.msra.mxu0 0
    %1095 = vmatprep.subr.bf16.mxu0 0
    %1096 = vmatpush1.bf16.msra.mxu0 0
    %1097 = vmatprep.subr.bf16.mxu0 0
    %1098 = vmatpush1.bf16.msra.mxu0 0
    %1099 = vmatprep.mubr.bf16.mxu0 0
    %1100 = vmatmul.mubr.bf16.gmra.mrb[0].mxu0 %v1066
    %v1101 = vpop.f32.mrb[0].mxu0
    %v1102 = vadd.f32 0.0, %v1101
    %v1103 = vpop.f32.mrb[0].mxu0
    %v1104 = vadd.f32 0.0, %v1103
    %v1105 = vpop.f32.mrb[0].mxu0
    %v1106 = vpop.f32.mrb[0].mxu0
    %1107 = vdwg.mxu0
    %1108 = vmatprep.subr.bf16.mxu0 %v431
    %1109 = vmatpush1.bf16.msra.mxu0 %v430
    %1110 = vmatprep.subr.bf16.mxu0 %v435
    %1111 = vmatpush1.bf16.msra.mxu0 %v434
    %1112 = vmatprep.subr.bf16.mxu0 %v439
    %1113 = vmatpush1.bf16.msra.mxu0 %v438
    %1114 = vmatprep.subr.bf16.mxu0 %v443
    %1115 = vmatpush1.bf16.msra.mxu0 %v442
    %1116 = vmatprep.subr.bf16.mxu0 %v447
    %1117 = vmatpush1.bf16.msra.mxu0 %v446
    %1118 = vmatprep.subr.bf16.mxu0 %v451
    %1119 = vmatpush1.bf16.msra.mxu0 %v450
    %1120 = vmatprep.subr.bf16.mxu0 %v455
    %1121 = vmatpush1.bf16.msra.mxu0 %v454
    %1122 = vmatprep.subr.bf16.mxu0 %v459
    %1123 = vmatpush1.bf16.msra.mxu0 %v458
    %1124 = vmatprep.subr.bf16.mxu0 0
    %1125 = vmatpush1.bf16.msra.mxu0 0
    %1126 = vmatprep.subr.bf16.mxu0 0
    %1127 = vmatpush1.bf16.msra.mxu0 0
    %1128 = vmatprep.subr.bf16.mxu0 0
    %1129 = vmatpush1.bf16.msra.mxu0 0
    %1130 = vmatprep.subr.bf16.mxu0 0
    %1131 = vmatpush1.bf16.msra.mxu0 0
    %1132 = vmatprep.subr.bf16.mxu0 0
    %1133 = vmatpush1.bf16.msra.mxu0 0
    %1134 = vmatprep.subr.bf16.mxu0 0
    %1135 = vmatpush1.bf16.msra.mxu0 0
    %1136 = vmatprep.subr.bf16.mxu0 0
    %1137 = vmatpush1.bf16.msra.mxu0 0
    %1138 = vmatprep.subr.bf16.mxu0 0
    %1139 = vmatpush1.bf16.msra.mxu0 0
    %1140 = vmatprep.mubr.bf16.mxu0 0
    %1141 = vmatmul.mubr.bf16.gmra.mrb[0].mxu0 %v1066
    %v1142 = vpop.f32.mrb[0].mxu0
    %v1143 = vadd.f32 0.0, %v1142
    %v1144 = vpop.f32.mrb[0].mxu0
    %v1145 = vadd.f32 0.0, %v1144
    %v1146 = vpop.f32.mrb[0].mxu0
    %v1147 = vpop.f32.mrb[0].mxu0
    %1148 = vdwg.mxu0
    %v1149 = vadd.f32 %v1062, %v1102
    %v1150 = vadd.f32 %v1063, %v1104
    %v1151 = vadd.f32 %v1064, %v1143
    %v1152 = vadd.f32 %v1065, %v1145
    %v1153 = vxor.u32 %v1149, 2147483648
    %v1154 = vxor.u32 %v1150, 2147483648
    %v1155 = vxor.u32 %v1151, 2147483648
    %v1156 = vmul.f32 %v1153, 1.442695
    %v1157 = vpow.pop %v1156
    %v1158 = vmul.f32 %v1154, 1.442695
    %v1159 = vpow.pop %v1158
    %v1160 = vmul.f32 %v1155, 1.442695
    %v1161 = vpow.pop %v1160
    %v1162 = vadd.f32 %v1157, 1.0
    %v1163 = vadd.f32 %v1159, 1.0
    %v1164 = vadd.f32 %v1161, 1.0
    %v1165 = vrcp.pop %v1162
    %v1166 = vmul.f32 1.0, %v1165
    %v1167 = vrcp.pop %v1163
    %v1168 = vmul.f32 1.0, %v1167
    %v1169 = vrcp.pop %v1164
    %v1170 = vmul.f32 1.0, %v1169
    %v1171 = vtanh.pop %v1152
    %v1172 = vmul.f32 %v1168, %v1059
    %v1173 = vmul.f32 %v1166, %v1171
    %v1174 = vadd.f32 %v1172, %v1173
    %v1175 = vtanh.pop %v1174
    %v1176 = vmul.f32 %v1170, %v1175
    %v1177 = vld [vmem:[#allocation2 + $0xc0] sm:$0xff]
    %v1178 = vld [vmem:[#allocation2 + $0xc8] sm:$0xff]
    %v1179 = vld [vmem:[#allocation2 + $0xd0] sm:$0xff]
    %v1180 = vld [vmem:[#allocation2 + $0xd8] sm:$0xff]
    %v1181 = vpack.c.bf16 %v1176, %v1176
    %1182 = vmatprep.subr.bf16.mxu0 %v429
    %1183 = vmatpush1.bf16.msra.mxu0 %v428
    %1184 = vmatprep.subr.bf16.mxu0 %v433
    %1185 = vmatpush1.bf16.msra.mxu0 %v432
    %1186 = vmatprep.subr.bf16.mxu0 %v437
    %1187 = vmatpush1.bf16.msra.mxu0 %v436
    %1188 = vmatprep.subr.bf16.mxu0 %v441
    %1189 = vmatpush1.bf16.msra.mxu0 %v440
    %1190 = vmatprep.subr.bf16.mxu0 %v445
    %1191 = vmatpush1.bf16.msra.mxu0 %v444
    %1192 = vmatprep.subr.bf16.mxu0 %v449
    %1193 = vmatpush1.bf16.msra.mxu0 %v448
    %1194 = vmatprep.subr.bf16.mxu0 %v453
    %1195 = vmatpush1.bf16.msra.mxu0 %v452
    %1196 = vmatprep.subr.bf16.mxu0 %v457
    %1197 = vmatpush1.bf16.msra.mxu0 %v456
    %1198 = vmatprep.subr.bf16.mxu0 0
    %1199 = vmatpush1.bf16.msra.mxu0 0
    %1200 = vmatprep.subr.bf16.mxu0 0
    %1201 = vmatpush1.bf16.msra.mxu0 0
    %1202 = vmatprep.subr.bf16.mxu0 0
    %1203 = vmatpush1.bf16.msra.mxu0 0
    %1204 = vmatprep.subr.bf16.mxu0 0
    %1205 = vmatpush1.bf16.msra.mxu0 0
    %1206 = vmatprep.subr.bf16.mxu0 0
    %1207 = vmatpush1.bf16.msra.mxu0 0
    %1208 = vmatprep.subr.bf16.mxu0 0
    %1209 = vmatpush1.bf16.msra.mxu0 0
    %1210 = vmatprep.subr.bf16.mxu0 0
    %1211 = vmatpush1.bf16.msra.mxu0 0
    %1212 = vmatprep.subr.bf16.mxu0 0
    %1213 = vmatpush1.bf16.msra.mxu0 0
    %1214 = vmatprep.mubr.bf16.mxu0 0
    %1215 = vmatmul.mubr.bf16.gmra.mrb[0].mxu0 %v1181
    %v1216 = vpop.f32.mrb[0].mxu0
    %v1217 = vadd.f32 0.0, %v1216
    %v1218 = vpop.f32.mrb[0].mxu0
    %v1219 = vadd.f32 0.0, %v1218
    %v1220 = vpop.f32.mrb[0].mxu0
    %v1221 = vpop.f32.mrb[0].mxu0
    %1222 = vdwg.mxu0
    %1223 = vmatprep.subr.bf16.mxu0 %v431
    %1224 = vmatpush1.bf16.msra.mxu0 %v430
    %1225 = vmatprep.subr.bf16.mxu0 %v435
    %1226 = vmatpush1.bf16.msra.mxu0 %v434
    %1227 = vmatprep.subr.bf16.mxu0 %v439
    %1228 = vmatpush1.bf16.msra.mxu0 %v438
    %1229 = vmatprep.subr.bf16.mxu0 %v443
    %1230 = vmatpush1.bf16.msra.mxu0 %v442
    %1231 = vmatprep.subr.bf16.mxu0 %v447
    %1232 = vmatpush1.bf16.msra.mxu0 %v446
    %1233 = vmatprep.subr.bf16.mxu0 %v451
    %1234 = vmatpush1.bf16.msra.mxu0 %v450
    %1235 = vmatprep.subr.bf16.mxu0 %v455
    %1236 = vmatpush1.bf16.msra.mxu0 %v454
    %1237 = vmatprep.subr.bf16.mxu0 %v459
    %1238 = vmatpush1.bf16.msra.mxu0 %v458
    %1239 = vmatprep.subr.bf16.mxu0 0
    %1240 = vmatpush1.bf16.msra.mxu0 0
    %1241 = vmatprep.subr.bf16.mxu0 0
    %1242 = vmatpush1.bf16.msra.mxu0 0
    %1243 = vmatprep.subr.bf16.mxu0 0
    %1244 = vmatpush1.bf16.msra.mxu0 0
    %1245 = vmatprep.subr.bf16.mxu0 0
    %1246 = vmatpush1.bf16.msra.mxu0 0
    %1247 = vmatprep.subr.bf16.mxu0 0
    %1248 = vmatpush1.bf16.msra.mxu0 0
    %1249 = vmatprep.subr.bf16.mxu0 0
    %1250 = vmatpush1.bf16.msra.mxu0 0
    %1251 = vmatprep.subr.bf16.mxu0 0
    %1252 = vmatpush1.bf16.msra.mxu0 0
    %1253 = vmatprep.subr.bf16.mxu0 0
    %1254 = vmatpush1.bf16.msra.mxu0 0
    %1255 = vmatprep.mubr.bf16.mxu0 0
    %1256 = vmatmul.mubr.bf16.gmra.mrb[0].mxu0 %v1181
    %v1257 = vpop.f32.mrb[0].mxu0
    %v1258 = vadd.f32 0.0, %v1257
    %v1259 = vpop.f32.mrb[0].mxu0
    %v1260 = vadd.f32 0.0, %v1259
    %v1261 = vpop.f32.mrb[0].mxu0
    %v1262 = vpop.f32.mrb[0].mxu0
    %1263 = vdwg.mxu0
    %v1264 = vadd.f32 %v1177, %v1217
    %v1265 = vadd.f32 %v1178, %v1219
    %v1266 = vadd.f32 %v1179, %v1258
    %v1267 = vadd.f32 %v1180, %v1260
    %v1268 = vxor.u32 %v1264, 2147483648
    %v1269 = vxor.u32 %v1265, 2147483648
    %v1270 = vxor.u32 %v1266, 2147483648
    %v1271 = vmul.f32 %v1268, 1.442695
    %v1272 = vpow.pop %v1271
    %v1273 = vmul.f32 %v1269, 1.442695
    %v1274 = vpow.pop %v1273
    %v1275 = vmul.f32 %v1270, 1.442695
    %v1276 = vpow.pop %v1275
    %v1277 = vadd.f32 %v1272, 1.0
    %v1278 = vadd.f32 %v1274, 1.0
    %v1279 = vadd.f32 %v1276, 1.0
    %v1280 = vrcp.pop %v1277
    %v1281 = vmul.f32 1.0, %v1280
    %v1282 = vrcp.pop %v1278
    %v1283 = vmul.f32 1.0, %v1282
    %v1284 = vrcp.pop %v1279
    %v1285 = vmul.f32 1.0, %v1284
    %v1286 = vtanh.pop %v1267
    %v1287 = vmul.f32 %v1283, %v1174
    %v1288 = vmul.f32 %v1281, %v1286
    %v1289 = vadd.f32 %v1287, %v1288
    %v1290 = vtanh.pop %v1289
    %v1291 = vmul.f32 %v1285, %v1290
    %v1292 = vld [vmem:[#allocation2 + $0xe0] sm:$0xff]
    %v1293 = vld [vmem:[#allocation2 + $0xe8] sm:$0xff]
    %v1294 = vld [vmem:[#allocation2 + $0xf0] sm:$0xff]
    %v1295 = vld [vmem:[#allocation2 + $0xf8] sm:$0xff]
    %v1296 = vpack.c.bf16 %v1291, %v1291
    %1297 = vmatprep.subr.bf16.mxu0 %v429
    %1298 = vmatpush1.bf16.msra.mxu0 %v428
    %1299 = vmatprep.subr.bf16.mxu0 %v433
    %1300 = vmatpush1.bf16.msra.mxu0 %v432
    %1301 = vmatprep.subr.bf16.mxu0 %v437
    %1302 = vmatpush1.bf16.msra.mxu0 %v436
    %1303 = vmatprep.subr.bf16.mxu0 %v441
    %1304 = vmatpush1.bf16.msra.mxu0 %v440
    %1305 = vmatprep.subr.bf16.mxu0 %v445
    %1306 = vmatpush1.bf16.msra.mxu0 %v444
    %1307 = vmatprep.subr.bf16.mxu0 %v449
    %1308 = vmatpush1.bf16.msra.mxu0 %v448
    %1309 = vmatprep.subr.bf16.mxu0 %v453
    %1310 = vmatpush1.bf16.msra.mxu0 %v452
    %1311 = vmatprep.subr.bf16.mxu0 %v457
    %1312 = vmatpush1.bf16.msra.mxu0 %v456
    %1313 = vmatprep.subr.bf16.mxu0 0
    %1314 = vmatpush1.bf16.msra.mxu0 0
    %1315 = vmatprep.subr.bf16.mxu0 0
    %1316 = vmatpush1.bf16.msra.mxu0 0
    %1317 = vmatprep.subr.bf16.mxu0 0
    %1318 = vmatpush1.bf16.msra.mxu0 0
    %1319 = vmatprep.subr.bf16.mxu0 0
    %1320 = vmatpush1.bf16.msra.mxu0 0
    %1321 = vmatprep.subr.bf16.mxu0 0
    %1322 = vmatpush1.bf16.msra.mxu0 0
    %1323 = vmatprep.subr.bf16.mxu0 0
    %1324 = vmatpush1.bf16.msra.mxu0 0
    %1325 = vmatprep.subr.bf16.mxu0 0
    %1326 = vmatpush1.bf16.msra.mxu0 0
    %1327 = vmatprep.subr.bf16.mxu0 0
    %1328 = vmatpush1.bf16.msra.mxu0 0
    %1329 = vmatprep.mubr.bf16.mxu0 0
    %1330 = vmatmul.mubr.bf16.gmra.mrb[0].mxu0 %v1296
    %v1331 = vpop.f32.mrb[0].mxu0
    %v1332 = vadd.f32 0.0, %v1331
    %v1333 = vpop.f32.mrb[0].mxu0
    %v1334 = vadd.f32 0.0, %v1333
    %v1335 = vpop.f32.mrb[0].mxu0
    %v1336 = vpop.f32.mrb[0].mxu0
    %1337 = vdwg.mxu0
    %1338 = vmatprep.subr.bf16.mxu0 %v431
    %1339 = vmatpush1.bf16.msra.mxu0 %v430
    %1340 = vmatprep.subr.bf16.mxu0 %v435
    %1341 = vmatpush1.bf16.msra.mxu0 %v434
    %1342 = vmatprep.subr.bf16.mxu0 %v439
    %1343 = vmatpush1.bf16.msra.mxu0 %v438
    %1344 = vmatprep.subr.bf16.mxu0 %v443
    %1345 = vmatpush1.bf16.msra.mxu0 %v442
    %1346 = vmatprep.subr.bf16.mxu0 %v447
    %1347 = vmatpush1.bf16.msra.mxu0 %v446
    %1348 = vmatprep.subr.bf16.mxu0 %v451
    %1349 = vmatpush1.bf16.msra.mxu0 %v450
    %1350 = vmatprep.subr.bf16.mxu0 %v455
    %1351 = vmatpush1.bf16.msra.mxu0 %v454
    %1352 = vmatprep.subr.bf16.mxu0 %v459
    %1353 = vmatpush1.bf16.msra.mxu0 %v458
    %1354 = vmatprep.subr.bf16.mxu0 0
    %1355 = vmatpush1.bf16.msra.mxu0 0
    %1356 = vmatprep.subr.bf16.mxu0 0
    %1357 = vmatpush1.bf16.msra.mxu0 0
    %1358 = vmatprep.subr.bf16.mxu0 0
    %1359 = vmatpush1.bf16.msra.mxu0 0
    %1360 = vmatprep.subr.bf16.mxu0 0
    %1361 = vmatpush1.bf16.msra.mxu0 0
    %1362 = vmatprep.subr.bf16.mxu0 0
    %1363 = vmatpush1.bf16.msra.mxu0 0
    %1364 = vmatprep.subr.bf16.mxu0 0
    %1365 = vmatpush1.bf16.msra.mxu0 0
    %1366 = vmatprep.subr.bf16.mxu0 0
    %1367 = vmatpush1.bf16.msra.mxu0 0
    %1368 = vmatprep.subr.bf16.mxu0 0
    %1369 = vmatpush1.bf16.msra.mxu0 0
    %1370 = vmatprep.mubr.bf16.mxu0 0
    %1371 = vmatmul.mubr.bf16.gmra.mrb[0].mxu0 %v1296
    %v1372 = vpop.f32.mrb[0].mxu0
    %v1373 = vadd.f32 0.0, %v1372
    %v1374 = vpop.f32.mrb[0].mxu0
    %v1375 = vadd.f32 0.0, %v1374
    %v1376 = vpop.f32.mrb[0].mxu0
    %v1377 = vpop.f32.mrb[0].mxu0
    %1378 = vdwg.mxu0
    %v1379 = vadd.f32 %v1292, %v1332
    %v1380 = vadd.f32 %v1293, %v1334
    %v1381 = vadd.f32 %v1294, %v1373
    %v1382 = vadd.f32 %v1295, %v1375
    %v1383 = vxor.u32 %v1379, 2147483648
    %v1384 = vxor.u32 %v1380, 2147483648
    %v1385 = vxor.u32 %v1381, 2147483648
    %v1386 = vmul.f32 %v1383, 1.442695
    %v1387 = vpow.pop %v1386
    %v1388 = vmul.f32 %v1384, 1.442695
    %v1389 = vpow.pop %v1388
    %v1390 = vmul.f32 %v1385, 1.442695
    %v1391 = vpow.pop %v1390
    %v1392 = vadd.f32 %v1387, 1.0
    %v1393 = vadd.f32 %v1389, 1.0
    %v1394 = vadd.f32 %v1391, 1.0
    %v1395 = vrcp.pop %v1392
    %v1396 = vmul.f32 1.0, %v1395
    %v1397 = vrcp.pop %v1393
    %v1398 = vmul.f32 1.0, %v1397
    %v1399 = vrcp.pop %v1394
    %v1400 = vmul.f32 1.0, %v1399
    %v1401 = vtanh.pop %v1382
    %v1402 = vmul.f32 %v1398, %v1289
    %v1403 = vmul.f32 %v1396, %v1401
    %v1404 = vadd.f32 %v1402, %v1403
    %v1405 = vtanh.pop %v1404
    %v1406 = vmul.f32 %v1400, %v1405
    %v1407 = vpack.c.bf16 %v1406, %v1406
    %v1408 = vld [vmem:[%s4] sm:$0xf]
    %v1409 = vld [vmem:[%s4 + $0x4] sm:$0xf]
    %v1410 = vld [vmem:[%s4 + $0x8] sm:$0xf]
    %v1411 = vld [vmem:[%s4 + $0xc] sm:$0xf]
    %v1412 = vld [vmem:[%s4 + $0x10] sm:$0xf]
    %v1413 = vld [vmem:[%s4 + $0x14] sm:$0xf]
    %v1414 = vld [vmem:[%s4 + $0x18] sm:$0xf]
    %v1415 = vld [vmem:[%s4 + $0x1c] sm:$0xf]
    %v1416 = vld [vmem:[%s4 + $0x20] sm:$0xf]
    %v1417 = vld [vmem:[%s4 + $0x24] sm:$0xf]
    %v1418 = vld [vmem:[%s4 + $0x28] sm:$0xf]
    %v1419 = vld [vmem:[%s4 + $0x2c] sm:$0xf]
    %v1420 = vld [vmem:[%s4 + $0x30] sm:$0xf]
    %v1421 = vld [vmem:[%s4 + $0x34] sm:$0xf]
    %v1422 = vld [vmem:[%s4 + $0x38] sm:$0xf]
    %v1423 = vld [vmem:[%s4 + $0x3c] sm:$0xf]
    %v1424 = vld [vmem:[%s5] sm:$0x1]
    %v1426 = vlaneseq
    %v1427 = vshrl.u32 %v1426, 7
    %v1428 = vsub.s32 0, %v1427
    %v1429 = vrot.slane %v1424, %v1428
    %v1447 = vunpack.c.l.b16 %v1408
    %v1448 = vunpack.c.l.b16 %v1409
    %v1449 = vunpack.c.l.b16 %v1410
    %v1450 = vunpack.c.l.b16 %v1411
    %v1451 = vunpack.c.l.b16 %v1412
    %v1452 = vunpack.c.l.b16 %v1413
    %v1453 = vunpack.c.l.b16 %v1414
    %v1454 = vunpack.c.l.b16 %v1415
    %v1455 = vunpack.c.l.b16 %v1416
    %v1456 = vunpack.c.l.b16 %v1417
    %v1457 = vunpack.c.l.b16 %v1418
    %v1458 = vunpack.c.l.b16 %v1419
    %v1459 = vunpack.c.l.b16 %v1420
    %v1460 = vunpack.c.l.b16 %v1421
    %v1461 = vunpack.c.l.b16 %v1422
    %v1462 = vunpack.c.l.b16 %v1423
    %v1463 = vpack.c.b16 %v1448, %v1447
    %v1464 = vpack.c.b16 %v1450, %v1449
    %v1465 = vpack.c.b16 %v1452, %v1451
    %v1466 = vpack.c.b16 %v1454, %v1453
    %v1467 = vpack.c.b16 %v1456, %v1455
    %v1468 = vpack.c.b16 %v1458, %v1457
    %v1469 = vpack.c.b16 %v1460, %v1459
    %v1470 = vpack.c.b16 %v1462, %v1461
    %1479 = vmatprep.subr.bf16.mxu0 0
    %1480 = vmatpush1.bf16.msra.mxu0 %v1463
    %1481 = vmatprep.subr.bf16.mxu0 0
    %1482 = vmatpush1.bf16.msra.mxu0 %v1464
    %1483 = vmatprep.subr.bf16.mxu0 0
    %1484 = vmatpush1.bf16.msra.mxu0 %v1465
    %1485 = vmatprep.subr.bf16.mxu0 0
    %1486 = vmatpush1.bf16.msra.mxu0 %v1466
    %1487 = vmatprep.subr.bf16.mxu0 0
    %1488 = vmatpush1.bf16.msra.mxu0 %v1467
    %1489 = vmatprep.subr.bf16.mxu0 0
    %1490 = vmatpush1.bf16.msra.mxu0 %v1468
    %1491 = vmatprep.subr.bf16.mxu0 0
    %1492 = vmatpush1.bf16.msra.mxu0 %v1469
    %1493 = vmatprep.subr.bf16.mxu0 0
    %1494 = vmatpush1.bf16.msra.mxu0 %v1470
    %1495 = vmatprep.subr.bf16.mxu0 0
    %1496 = vmatpush1.bf16.msra.mxu0 0
    %1497 = vmatprep.subr.bf16.mxu0 0
    %1498 = vmatpush1.bf16.msra.mxu0 0
    %1499 = vmatprep.subr.bf16.mxu0 0
    %1500 = vmatpush1.bf16.msra.mxu0 0
    %1501 = vmatprep.subr.bf16.mxu0 0
    %1502 = vmatpush1.bf16.msra.mxu0 0
    %1503 = vmatprep.subr.bf16.mxu0 0
    %1504 = vmatpush1.bf16.msra.mxu0 0
    %1505 = vmatprep.subr.bf16.mxu0 0
    %1506 = vmatpush1.bf16.msra.mxu0 0
    %1507 = vmatprep.subr.bf16.mxu0 0
    %1508 = vmatpush1.bf16.msra.mxu0 0
    %1509 = vmatprep.subr.bf16.mxu0 0
    %1510 = vmatpush1.bf16.msra.mxu0 0
    %1511 = vmatprep.mubr.bf16.mxu0 0
    %1512 = vmatmul.mubr.bf16.gmra.mrb[0].mxu0 %v1407
    %v1513 = vpop.f32.mrb[0].mxu0
    %v1514 = vadd.f32 %v1429, %v1513
    %v1515 = vpop.f32.mrb[0].mxu0
    %v1516 = vpop.f32.mrb[0].mxu0
    %v1517 = vpop.f32.mrb[0].mxu0
    %1518 = vdwg.mxu0
    %v1519 = vmax.f32 %v1514, -1.0
    %v1520 = vmin.f32 %v1519, 1.0
    %1521 = vst [vmem:[#allocation6] sm:$0xff] %v1520
    // Predicated region
    $region30: #{tpu_custom_call.1} parent=1 // pred_check
      _
    $region31: #{tpu_custom_call.1} parent=1 // pred_check_branch
      %1523 = sbr.rel (0) target = $region33
    $region32: #{tpu_custom_call.1} parent=1 // pred_region
      %s1525 = ssub.s32 128, 128
      %1526 = vsyncadd [#allocation5], %s1525
      %s1528 = sshll.u32 [#allocation6], 4
      %s1529 = int_to_ptr.vmem [resolvable:$true] %s1528
      %1531 = dma.vmem_to_hbm [thread:$0]  %s1529, 128, %s6, [#allocation5]
    $region33: #{tpu_custom_call.1} parent=1 // pred_fallthru
      _
    // Predicated region
    $region34: #{tpu_custom_call.1} parent=1 // pred_check
      _
    $region35: #{tpu_custom_call.1} parent=1 // pred_check_branch
      %1533 = sbr.rel (0) target = $region37
    $region36: #{tpu_custom_call.1} parent=1 // pred_region
      %1534 = dma.done [#allocation5], 128
    $region37: #{tpu_custom_call.1} parent=1 // pred_fallthru
      _
    %1535 = vsyncpa [#allocation4], 1
    %1536 = vsyncpa [#allocation5], 1

</llo_original>
